<compile_context>
chip_gen: v7x
topology: tpu7x:2x2x1
jax: 0.10.0
libtpu: 0.0.40
codegen_flags: <defaults>
</compile_context>

<pallas_src>
import jax
import jax.numpy as jnp
from jax import lax
from jax.experimental import pallas as pl
from jax.experimental.pallas import tpu as pltpu


CHUNK = 512  # lane-chunk for in-kernel strip-mining (caps vreg pressure)


def kbln_kernel(q_ref, emb_e_ref, nh_ref, nt_ref, wnf_ref, out_ref):
    # q_ref     : (TB, D)  bf16  -- e1_emb * rel_emb (precomputed, gathered)
    # emb_e_ref : (TE, D)  bf16  -- entity-embedding tile
    # nh_ref    : (TB, L)  f32   -- (n_h - c) * rsqrt(var) for this batch tile
    # nt_ref    : (L, TE)  bf16  -- (n_t * rsqrt(var)).T tile (entity lane-major)
    # wnf_ref   : (TB, L)  f32   -- gathered nf_weights
    # out_ref   : (TB, TE) f32   -- sigmoid scores for this (batch, entity) tile
    q = q_ref[...]          # loaded once, reused by every chunk
    nh = nh_ref[...]
    wnf = wnf_ref[...]
    L = nh.shape[1]
    n_chunks = out_ref.shape[1] // CHUNK  # static; TE is a CHUNK multiple

    def chunk_body(ci, carry):
        off = pl.multiple_of(ci * CHUNK, CHUNK)
        e_blk = emb_e_ref[pl.ds(off, CHUNK), :]                      # (CHUNK, D)
        # score_l = q @ e_blk.T; the MXU handles the transposed-RHS contraction
        # natively (no per-tile vxpose), f32 accumulation.
        score = lax.dot_general(
            q, e_blk,
            dimension_numbers=(((1,), (1,)), ((), ())),
            preferred_element_type=jnp.float32)                      # (TB, CHUNK)
        # Upcast the bf16 nt stream once per chunk, reuse across all L terms.
        nt_blk = nt_ref[:, pl.ds(off, CHUNK)].astype(jnp.float32)    # (L, CHUNK)
        # RBF part: unrolled over the small static literal axis so every op is
        # a lane-dense (TB, CHUNK) vreg op; kept in f32 for v5e compatibility
        # and to hold the 1e-4 tolerance.
        for l in range(L):
            d = nh[:, l:l + 1] - nt_blk[l:l + 1, :]                  # (TB, CHUNK)
            score = score + wnf[:, l:l + 1] * jnp.exp(-(d * d))
        out_ref[:, pl.ds(off, CHUNK)] = jax.nn.sigmoid(score)
        return carry

    # Non-unrolled loop bounds vreg live ranges to a single chunk, so a large
    # DMA tile (tile_e up to 4096) never spills.
    lax.fori_loop(0, n_chunks, chunk_body, 0)


def _round_up(x, m):
    return ((x + m - 1) // m) * m


def _pick_tile_e(E, requested):
    tile = max(CHUNK, (requested // CHUNK) * CHUNK)          # chunk-aligned
    # keep >= 2 entity tiles when E allows it: on v7x the "parallel" entity
    # axis is split across 2 TensorCores; a single tile idles one core.
    if E > CHUNK and pl.cdiv(E, tile) < 2:
        tile = max(CHUNK, _round_up(pl.cdiv(E, 2), CHUNK))
    return tile


def _pick_tile_b(B, cap=128):
    return min(_round_up(B, 8), _round_up(cap, 8))


def kbln_forward(e1_emb, rel_emb, emb_e, n_h, n_t, c, var, w_nf,
                 *, tile_e=2048, tile_b=128):
    """Pallas entry point. Returns sigmoid scores of shape (B, num_ents)."""
    B, D = e1_emb.shape
    E = emb_e.shape[0]
    L = n_t.shape[1]

    # Wrapper-side algebraic folding of c and 1/var (exact).
    inv_sqrt_var = lax.rsqrt(var.astype(jnp.float32))                 # (L,)
    nh_s = (n_h.astype(jnp.float32) - c) * inv_sqrt_var               # (B, L)
    nt_s_t = (n_t.astype(jnp.float32) * inv_sqrt_var).T               # (L, E)
    w_nf = w_nf.astype(jnp.float32)

    # bf16 for the dominant HBM streams (MXU-native); nt also bf16 to trim the
    # second-largest stream (upcast per chunk in-kernel; RBF math stays f32).
    q = (e1_emb * rel_emb).astype(jnp.bfloat16)                       # (B, D)
    emb_e_b = emb_e.astype(jnp.bfloat16)                              # (E, D)
    nt_s_t = nt_s_t.astype(jnp.bfloat16)                              # (L, E)

    te = _pick_tile_e(E, tile_e)
    tb = _pick_tile_b(B, tile_b)
    n_te = pl.cdiv(E, te)
    n_tb = pl.cdiv(B, tb)
    E_pad = n_te * te
    B_pad = n_tb * tb

    if E_pad != E:
        emb_e_b = jnp.pad(emb_e_b, ((0, E_pad - E), (0, 0)))
        nt_s_t = jnp.pad(nt_s_t, ((0, 0), (0, E_pad - E)))
    if B_pad != B:
        q = jnp.pad(q, ((0, B_pad - B), (0, 0)))
        nh_s = jnp.pad(nh_s, ((0, B_pad - B), (0, 0)))
        w_nf = jnp.pad(w_nf, ((0, B_pad - B), (0, 0)))

    cost = pl.CostEstimate(
        flops=2 * B_pad * D * E_pad + 6 * L * B_pad * E_pad,
        transcendentals=B_pad * E_pad * (L + 1),            # exps + sigmoid
        bytes_accessed=(E_pad * D * 2                        # emb_e (read once)
                        + L * E_pad * 2                      # nt
                        + n_te * B_pad * (D * 2 + 2 * L * 4)  # q/nh/wnf re-reads
                        + B_pad * E_pad * 4),                # out
    )

    out = pl.pallas_call(
        kbln_kernel,
        out_shape=jax.ShapeDtypeStruct((B_pad, E_pad), jnp.float32),
        grid_spec=pltpu.PrefetchScalarGridSpec(
            num_scalar_prefetch=0,
            # entity tiles outer ("parallel": megacore split), batch tiles
            # inner so the emb_e / nt blocks stay resident across the batch.
            grid=(n_te, n_tb),
            in_specs=[
                pl.BlockSpec((tb, D), lambda i, j: (j, 0)),      # q
                pl.BlockSpec((te, D), lambda i, j: (i, 0)),      # emb_e tile
                pl.BlockSpec((tb, L), lambda i, j: (j, 0)),      # nh_s
                pl.BlockSpec((L, te), lambda i, j: (0, i)),      # nt_s.T tile
                pl.BlockSpec((tb, L), lambda i, j: (j, 0)),      # w_nf
            ],
            out_specs=pl.BlockSpec((tb, te), lambda i, j: (j, i)),
        ),
        compiler_params=pltpu.CompilerParams(
            dimension_semantics=("parallel", "arbitrary")),
        cost_estimate=cost,
    )(q, emb_e_b, nh_s, nt_s_t, w_nf)

    return out[:B, :E]


def xavier_normal(key, shape):
    fan_in, fan_out = shape[1], shape[0]
    std = (2.0 / (fan_in + fan_out)) ** 0.5
    return std * jax.random.normal(key, shape, dtype=jnp.float32)


if __name__ == "__main__":
    # Small synthetic configuration consistent with the module's __init__.
    num_ents = 1000        # NOT a tile multiple: exercises padding and the
                           # >=2-entity-tile picker (tile_e -> 512, 2 tiles).
    num_rels = 4
    emb_dim = 128          # p.init_dim
    n_lit = 16             # numerical_literals.shape[1]
    batch = 8

    key = jax.random.PRNGKey(0)
    (k_emb_e, k_emb_rel, k_nf, k_lit, k_c, k_var, k_e1, k_rel) = jax.random.split(key, 8)

    # Deterministic parameter init (xavier_normal as in get_param).
    emb_e = xavier_normal(k_emb_e, (num_ents, emb_dim))
    emb_rel = xavier_normal(k_emb_rel, (num_rels * 2, emb_dim))
    nf_weights = xavier_normal(k_nf, (num_rels * 2, n_lit))
    numerical_literals = jax.random.uniform(k_lit, (num_ents, n_lit), dtype=jnp.float32)
    c = jax.random.normal(k_c, (n_lit,), dtype=jnp.float32)
    var = jax.random.uniform(k_var, (n_lit,), dtype=jnp.float32,
                             minval=0.5, maxval=1.5)

    # Example forward inputs (g and e2_multi are unused by the score path).
    e1 = jax.random.randint(k_e1, (batch,), 0, num_ents)
    rel = jax.random.randint(k_rel, (batch,), 0, num_rels * 2)

    # Gathers (index_select) are plain-JAX glue; the hot path is the kernel.
    e1_emb = emb_e[e1]                       # (B, D)
    rel_emb = emb_rel[rel]                   # (B, D)
    n_h = numerical_literals[e1]             # (B, L)
    w_nf = nf_weights[rel]                   # (B, L)

    score = kbln_forward(e1_emb, rel_emb, emb_e, n_h, numerical_literals,
                         c, var, w_nf)
    score = jax.block_until_ready(score)

    # Pure-JAX reference mirroring the kernel's precision choices (bf16 q/emb_e
    # dot, bf16-quantized nt stream, f32 RBF with folded c / rsqrt(var)).
    q_b = (e1_emb * rel_emb).astype(jnp.bfloat16)
    score_l_ref = jnp.dot(q_b, emb_e.astype(jnp.bfloat16).T,
                          preferred_element_type=jnp.float32)
    inv = lax.rsqrt(var)
    nh_s_ref = (n_h - c) * inv
    nt_s_ref = (numerical_literals * inv).astype(jnp.bfloat16).astype(jnp.float32)
    d_ref = nh_s_ref[:, None, :] - nt_s_ref[None, :, :]
    score_n_ref = jnp.einsum("bel,bl->be", jnp.exp(-(d_ref * d_ref)), w_nf)
    score_ref = jax.nn.sigmoid(score_l_ref + score_n_ref)

    assert score.shape == (batch, num_ents)
    max_err = float(jnp.max(jnp.abs(score - score_ref)))
    assert jnp.allclose(score, score_ref, atol=1e-4, rtol=1e-4), max_err

    print("KERNEL_OK")
</pallas_src>

<mosaic_0001>
module attributes {stable_mosaic.version = 11 : i64} {
  func.func @kbln_kernel(%arg0: i32, %arg1: i32, %arg2: memref<8x128xbf16, #tpu.memory_space<vmem>>, %arg3: memref<512x128xbf16, #tpu.memory_space<vmem>>, %arg4: memref<8x16xf32, #tpu.memory_space<vmem>>, %arg5: memref<16x512xbf16, #tpu.memory_space<vmem>>, %arg6: memref<8x16xf32, #tpu.memory_space<vmem>>, %arg7: memref<8x512xf32, #tpu.memory_space<vmem>>) attributes {dimension_semantics = [#tpu.dimension_semantics<parallel>, #tpu.dimension_semantics<arbitrary>], iteration_bounds = array<i64: 2, 1>, scalar_prefetch = 0 : i64, scratch_operands = 0 : i64, tpu.core_type = #tpu.core_type<tc>, window_params = [{transform_indices = @transform_0, window_bounds = array<i64: 8, 128>}, {transform_indices = @transform_1, window_bounds = array<i64: 512, 128>}, {transform_indices = @transform_2, window_bounds = array<i64: 8, 16>}, {transform_indices = @transform_3, window_bounds = array<i64: 16, 512>}, {transform_indices = @transform_4, window_bounds = array<i64: 8, 16>}, {transform_indices = @transform_5, window_bounds = array<i64: 8, 512>}]} {
    %c0 = arith.constant 0 : index
    %c0_0 = arith.constant 0 : index
    %0 = vector.load %arg2[%c0, %c0_0] : memref<8x128xbf16, #tpu.memory_space<vmem>>, vector<8x128xbf16>
    %c0_1 = arith.constant 0 : index
    %c0_2 = arith.constant 0 : index
    %1 = vector.load %arg4[%c0_1, %c0_2] : memref<8x16xf32, #tpu.memory_space<vmem>>, vector<8x16xf32>
    %c0_3 = arith.constant 0 : index
    %c0_4 = arith.constant 0 : index
    %2 = vector.load %arg6[%c0_3, %c0_4] : memref<8x16xf32, #tpu.memory_space<vmem>>, vector<8x16xf32>
    %c0_i32 = arith.constant 0 : i32
    %c512_i32 = arith.constant 512 : i32
    %3 = arith.muli %c0_i32, %c512_i32 : i32
    %4 = tpu.assume_multiple %3, 512 : i32
    %5 = arith.index_cast %4 : i32 to index
    %c0_5 = arith.constant 0 : index
    %6 = vector.load %arg3[%5, %c0_5] : memref<512x128xbf16, #tpu.memory_space<vmem>>, vector<512x128xbf16>
    %cst = arith.constant dense<0.000000e+00> : vector<8x512xf32>
    %7 = tpu.matmul %0, %6, %cst {dimension_numbers = #tpu.dot_dimension_numbers<[1], [1], [0], [0], [0, 0, 1, 0], [], []>} : vector<8x128xbf16>, vector<512x128xbf16>, vector<8x512xf32> -> vector<8x512xf32>
    %c0_6 = arith.constant 0 : index
    %8 = arith.index_cast %4 : i32 to index
    %9 = vector.load %arg5[%c0_6, %8] : memref<16x512xbf16, #tpu.memory_space<vmem>>, vector<16x512xbf16>
    %10 = arith.extf %9 : vector<16x512xbf16> to vector<16x512xf32>
    %11 = vector.extract_strided_slice %1 {offsets = [0, 0], sizes = [8, 1], strides = [1, 1]} : vector<8x16xf32> to vector<8x1xf32>
    %12 = vector.extract_strided_slice %10 {offsets = [0, 0], sizes = [1, 512], strides = [1, 1]} : vector<16x512xf32> to vector<1x512xf32>
    %13 = vector.broadcast %11 : vector<8x1xf32> to vector<8x512xf32>
    %14 = vector.broadcast %12 : vector<1x512xf32> to vector<8x512xf32>
    %15 = arith.subf %13, %14 : vector<8x512xf32>
    %16 = vector.extract_strided_slice %2 {offsets = [0, 0], sizes = [8, 1], strides = [1, 1]} : vector<8x16xf32> to vector<8x1xf32>
    %17 = arith.mulf %15, %15 : vector<8x512xf32>
    %cst_7 = arith.constant 0.000000e+00 : f32
    %18 = vector.broadcast %cst_7 : f32 to vector<8x512xf32>
    %19 = arith.subf %18, %17 : vector<8x512xf32>
    %20 = math.exp %19 : vector<8x512xf32>
    %21 = vector.broadcast %16 : vector<8x1xf32> to vector<8x512xf32>
    %22 = arith.mulf %21, %20 : vector<8x512xf32>
    %23 = arith.addf %7, %22 : vector<8x512xf32>
    %24 = vector.extract_strided_slice %1 {offsets = [0, 1], sizes = [8, 1], strides = [1, 1]} : vector<8x16xf32> to vector<8x1xf32>
    %25 = vector.extract_strided_slice %10 {offsets = [1, 0], sizes = [1, 512], strides = [1, 1]} : vector<16x512xf32> to vector<1x512xf32>
    %26 = vector.broadcast %24 : vector<8x1xf32> to vector<8x512xf32>
    %27 = vector.broadcast %25 : vector<1x512xf32> to vector<8x512xf32>
    %28 = arith.subf %26, %27 : vector<8x512xf32>
    %29 = vector.extract_strided_slice %2 {offsets = [0, 1], sizes = [8, 1], strides = [1, 1]} : vector<8x16xf32> to vector<8x1xf32>
    %30 = arith.mulf %28, %28 : vector<8x512xf32>
    %cst_8 = arith.constant 0.000000e+00 : f32
    %31 = vector.broadcast %cst_8 : f32 to vector<8x512xf32>
    %32 = arith.subf %31, %30 : vector<8x512xf32>
    %33 = math.exp %32 : vector<8x512xf32>
    %34 = vector.broadcast %29 : vector<8x1xf32> to vector<8x512xf32>
    %35 = arith.mulf %34, %33 : vector<8x512xf32>
    %36 = arith.addf %23, %35 : vector<8x512xf32>
    %37 = vector.extract_strided_slice %1 {offsets = [0, 2], sizes = [8, 1], strides = [1, 1]} : vector<8x16xf32> to vector<8x1xf32>
    %38 = vector.extract_strided_slice %10 {offsets = [2, 0], sizes = [1, 512], strides = [1, 1]} : vector<16x512xf32> to vector<1x512xf32>
    %39 = vector.broadcast %37 : vector<8x1xf32> to vector<8x512xf32>
    %40 = vector.broadcast %38 : vector<1x512xf32> to vector<8x512xf32>
    %41 = arith.subf %39, %40 : vector<8x512xf32>
    %42 = vector.extract_strided_slice %2 {offsets = [0, 2], sizes = [8, 1], strides = [1, 1]} : vector<8x16xf32> to vector<8x1xf32>
    %43 = arith.mulf %41, %41 : vector<8x512xf32>
    %cst_9 = arith.constant 0.000000e+00 : f32
    %44 = vector.broadcast %cst_9 : f32 to vector<8x512xf32>
    %45 = arith.subf %44, %43 : vector<8x512xf32>
    %46 = math.exp %45 : vector<8x512xf32>
    %47 = vector.broadcast %42 : vector<8x1xf32> to vector<8x512xf32>
    %48 = arith.mulf %47, %46 : vector<8x512xf32>
    %49 = arith.addf %36, %48 : vector<8x512xf32>
    %50 = vector.extract_strided_slice %1 {offsets = [0, 3], sizes = [8, 1], strides = [1, 1]} : vector<8x16xf32> to vector<8x1xf32>
    %51 = vector.extract_strided_slice %10 {offsets = [3, 0], sizes = [1, 512], strides = [1, 1]} : vector<16x512xf32> to vector<1x512xf32>
    %52 = vector.broadcast %50 : vector<8x1xf32> to vector<8x512xf32>
    %53 = vector.broadcast %51 : vector<1x512xf32> to vector<8x512xf32>
    %54 = arith.subf %52, %53 : vector<8x512xf32>
    %55 = vector.extract_strided_slice %2 {offsets = [0, 3], sizes = [8, 1], strides = [1, 1]} : vector<8x16xf32> to vector<8x1xf32>
    %56 = arith.mulf %54, %54 : vector<8x512xf32>
    %cst_10 = arith.constant 0.000000e+00 : f32
    %57 = vector.broadcast %cst_10 : f32 to vector<8x512xf32>
    %58 = arith.subf %57, %56 : vector<8x512xf32>
    %59 = math.exp %58 : vector<8x512xf32>
    %60 = vector.broadcast %55 : vector<8x1xf32> to vector<8x512xf32>
    %61 = arith.mulf %60, %59 : vector<8x512xf32>
    %62 = arith.addf %49, %61 : vector<8x512xf32>
    %63 = vector.extract_strided_slice %1 {offsets = [0, 4], sizes = [8, 1], strides = [1, 1]} : vector<8x16xf32> to vector<8x1xf32>
    %64 = vector.extract_strided_slice %10 {offsets = [4, 0], sizes = [1, 512], strides = [1, 1]} : vector<16x512xf32> to vector<1x512xf32>
    %65 = vector.broadcast %63 : vector<8x1xf32> to vector<8x512xf32>
    %66 = vector.broadcast %64 : vector<1x512xf32> to vector<8x512xf32>
    %67 = arith.subf %65, %66 : vector<8x512xf32>
    %68 = vector.extract_strided_slice %2 {offsets = [0, 4], sizes = [8, 1], strides = [1, 1]} : vector<8x16xf32> to vector<8x1xf32>
    %69 = arith.mulf %67, %67 : vector<8x512xf32>
    %cst_11 = arith.constant 0.000000e+00 : f32
    %70 = vector.broadcast %cst_11 : f32 to vector<8x512xf32>
    %71 = arith.subf %70, %69 : vector<8x512xf32>
    %72 = math.exp %71 : vector<8x512xf32>
    %73 = vector.broadcast %68 : vector<8x1xf32> to vector<8x512xf32>
    %74 = arith.mulf %73, %72 : vector<8x512xf32>
    %75 = arith.addf %62, %74 : vector<8x512xf32>
    %76 = vector.extract_strided_slice %1 {offsets = [0, 5], sizes = [8, 1], strides = [1, 1]} : vector<8x16xf32> to vector<8x1xf32>
    %77 = vector.extract_strided_slice %10 {offsets = [5, 0], sizes = [1, 512], strides = [1, 1]} : vector<16x512xf32> to vector<1x512xf32>
    %78 = vector.broadcast %76 : vector<8x1xf32> to vector<8x512xf32>
    %79 = vector.broadcast %77 : vector<1x512xf32> to vector<8x512xf32>
    %80 = arith.subf %78, %79 : vector<8x512xf32>
    %81 = vector.extract_strided_slice %2 {offsets = [0, 5], sizes = [8, 1], strides = [1, 1]} : vector<8x16xf32> to vector<8x1xf32>
    %82 = arith.mulf %80, %80 : vector<8x512xf32>
    %cst_12 = arith.constant 0.000000e+00 : f32
    %83 = vector.broadcast %cst_12 : f32 to vector<8x512xf32>
    %84 = arith.subf %83, %82 : vector<8x512xf32>
    %85 = math.exp %84 : vector<8x512xf32>
    %86 = vector.broadcast %81 : vector<8x1xf32> to vector<8x512xf32>
    %87 = arith.mulf %86, %85 : vector<8x512xf32>
    %88 = arith.addf %75, %87 : vector<8x512xf32>
    %89 = vector.extract_strided_slice %1 {offsets = [0, 6], sizes = [8, 1], strides = [1, 1]} : vector<8x16xf32> to vector<8x1xf32>
    %90 = vector.extract_strided_slice %10 {offsets = [6, 0], sizes = [1, 512], strides = [1, 1]} : vector<16x512xf32> to vector<1x512xf32>
    %91 = vector.broadcast %89 : vector<8x1xf32> to vector<8x512xf32>
    %92 = vector.broadcast %90 : vector<1x512xf32> to vector<8x512xf32>
    %93 = arith.subf %91, %92 : vector<8x512xf32>
    %94 = vector.extract_strided_slice %2 {offsets = [0, 6], sizes = [8, 1], strides = [1, 1]} : vector<8x16xf32> to vector<8x1xf32>
    %95 = arith.mulf %93, %93 : vector<8x512xf32>
    %cst_13 = arith.constant 0.000000e+00 : f32
    %96 = vector.broadcast %cst_13 : f32 to vector<8x512xf32>
    %97 = arith.subf %96, %95 : vector<8x512xf32>
    %98 = math.exp %97 : vector<8x512xf32>
    %99 = vector.broadcast %94 : vector<8x1xf32> to vector<8x512xf32>
    %100 = arith.mulf %99, %98 : vector<8x512xf32>
    %101 = arith.addf %88, %100 : vector<8x512xf32>
    %102 = vector.extract_strided_slice %1 {offsets = [0, 7], sizes = [8, 1], strides = [1, 1]} : vector<8x16xf32> to vector<8x1xf32>
    %103 = vector.extract_strided_slice %10 {offsets = [7, 0], sizes = [1, 512], strides = [1, 1]} : vector<16x512xf32> to vector<1x512xf32>
    %104 = vector.broadcast %102 : vector<8x1xf32> to vector<8x512xf32>
    %105 = vector.broadcast %103 : vector<1x512xf32> to vector<8x512xf32>
    %106 = arith.subf %104, %105 : vector<8x512xf32>
    %107 = vector.extract_strided_slice %2 {offsets = [0, 7], sizes = [8, 1], strides = [1, 1]} : vector<8x16xf32> to vector<8x1xf32>
    %108 = arith.mulf %106, %106 : vector<8x512xf32>
    %cst_14 = arith.constant 0.000000e+00 : f32
    %109 = vector.broadcast %cst_14 : f32 to vector<8x512xf32>
    %110 = arith.subf %109, %108 : vector<8x512xf32>
    %111 = math.exp %110 : vector<8x512xf32>
    %112 = vector.broadcast %107 : vector<8x1xf32> to vector<8x512xf32>
    %113 = arith.mulf %112, %111 : vector<8x512xf32>
    %114 = arith.addf %101, %113 : vector<8x512xf32>
    %115 = vector.extract_strided_slice %1 {offsets = [0, 8], sizes = [8, 1], strides = [1, 1]} : vector<8x16xf32> to vector<8x1xf32>
    %116 = vector.extract_strided_slice %10 {offsets = [8, 0], sizes = [1, 512], strides = [1, 1]} : vector<16x512xf32> to vector<1x512xf32>
    %117 = vector.broadcast %115 : vector<8x1xf32> to vector<8x512xf32>
    %118 = vector.broadcast %116 : vector<1x512xf32> to vector<8x512xf32>
    %119 = arith.subf %117, %118 : vector<8x512xf32>
    %120 = vector.extract_strided_slice %2 {offsets = [0, 8], sizes = [8, 1], strides = [1, 1]} : vector<8x16xf32> to vector<8x1xf32>
    %121 = arith.mulf %119, %119 : vector<8x512xf32>
    %cst_15 = arith.constant 0.000000e+00 : f32
    %122 = vector.broadcast %cst_15 : f32 to vector<8x512xf32>
    %123 = arith.subf %122, %121 : vector<8x512xf32>
    %124 = math.exp %123 : vector<8x512xf32>
    %125 = vector.broadcast %120 : vector<8x1xf32> to vector<8x512xf32>
    %126 = arith.mulf %125, %124 : vector<8x512xf32>
    %127 = arith.addf %114, %126 : vector<8x512xf32>
    %128 = vector.extract_strided_slice %1 {offsets = [0, 9], sizes = [8, 1], strides = [1, 1]} : vector<8x16xf32> to vector<8x1xf32>
    %129 = vector.extract_strided_slice %10 {offsets = [9, 0], sizes = [1, 512], strides = [1, 1]} : vector<16x512xf32> to vector<1x512xf32>
    %130 = vector.broadcast %128 : vector<8x1xf32> to vector<8x512xf32>
    %131 = vector.broadcast %129 : vector<1x512xf32> to vector<8x512xf32>
    %132 = arith.subf %130, %131 : vector<8x512xf32>
    %133 = vector.extract_strided_slice %2 {offsets = [0, 9], sizes = [8, 1], strides = [1, 1]} : vector<8x16xf32> to vector<8x1xf32>
    %134 = arith.mulf %132, %132 : vector<8x512xf32>
    %cst_16 = arith.constant 0.000000e+00 : f32
    %135 = vector.broadcast %cst_16 : f32 to vector<8x512xf32>
    %136 = arith.subf %135, %134 : vector<8x512xf32>
    %137 = math.exp %136 : vector<8x512xf32>
    %138 = vector.broadcast %133 : vector<8x1xf32> to vector<8x512xf32>
    %139 = arith.mulf %138, %137 : vector<8x512xf32>
    %140 = arith.addf %127, %139 : vector<8x512xf32>
    %141 = vector.extract_strided_slice %1 {offsets = [0, 10], sizes = [8, 1], strides = [1, 1]} : vector<8x16xf32> to vector<8x1xf32>
    %142 = vector.extract_strided_slice %10 {offsets = [10, 0], sizes = [1, 512], strides = [1, 1]} : vector<16x512xf32> to vector<1x512xf32>
    %143 = vector.broadcast %141 : vector<8x1xf32> to vector<8x512xf32>
    %144 = vector.broadcast %142 : vector<1x512xf32> to vector<8x512xf32>
    %145 = arith.subf %143, %144 : vector<8x512xf32>
    %146 = vector.extract_strided_slice %2 {offsets = [0, 10], sizes = [8, 1], strides = [1, 1]} : vector<8x16xf32> to vector<8x1xf32>
    %147 = arith.mulf %145, %145 : vector<8x512xf32>
    %cst_17 = arith.constant 0.000000e+00 : f32
    %148 = vector.broadcast %cst_17 : f32 to vector<8x512xf32>
    %149 = arith.subf %148, %147 : vector<8x512xf32>
    %150 = math.exp %149 : vector<8x512xf32>
    %151 = vector.broadcast %146 : vector<8x1xf32> to vector<8x512xf32>
    %152 = arith.mulf %151, %150 : vector<8x512xf32>
    %153 = arith.addf %140, %152 : vector<8x512xf32>
    %154 = vector.extract_strided_slice %1 {offsets = [0, 11], sizes = [8, 1], strides = [1, 1]} : vector<8x16xf32> to vector<8x1xf32>
    %155 = vector.extract_strided_slice %10 {offsets = [11, 0], sizes = [1, 512], strides = [1, 1]} : vector<16x512xf32> to vector<1x512xf32>
    %156 = vector.broadcast %154 : vector<8x1xf32> to vector<8x512xf32>
    %157 = vector.broadcast %155 : vector<1x512xf32> to vector<8x512xf32>
    %158 = arith.subf %156, %157 : vector<8x512xf32>
    %159 = vector.extract_strided_slice %2 {offsets = [0, 11], sizes = [8, 1], strides = [1, 1]} : vector<8x16xf32> to vector<8x1xf32>
    %160 = arith.mulf %158, %158 : vector<8x512xf32>
    %cst_18 = arith.constant 0.000000e+00 : f32
    %161 = vector.broadcast %cst_18 : f32 to vector<8x512xf32>
    %162 = arith.subf %161, %160 : vector<8x512xf32>
    %163 = math.exp %162 : vector<8x512xf32>
    %164 = vector.broadcast %159 : vector<8x1xf32> to vector<8x512xf32>
    %165 = arith.mulf %164, %163 : vector<8x512xf32>
    %166 = arith.addf %153, %165 : vector<8x512xf32>
    %167 = vector.extract_strided_slice %1 {offsets = [0, 12], sizes = [8, 1], strides = [1, 1]} : vector<8x16xf32> to vector<8x1xf32>
    %168 = vector.extract_strided_slice %10 {offsets = [12, 0], sizes = [1, 512], strides = [1, 1]} : vector<16x512xf32> to vector<1x512xf32>
    %169 = vector.broadcast %167 : vector<8x1xf32> to vector<8x512xf32>
    %170 = vector.broadcast %168 : vector<1x512xf32> to vector<8x512xf32>
    %171 = arith.subf %169, %170 : vector<8x512xf32>
    %172 = vector.extract_strided_slice %2 {offsets = [0, 12], sizes = [8, 1], strides = [1, 1]} : vector<8x16xf32> to vector<8x1xf32>
    %173 = arith.mulf %171, %171 : vector<8x512xf32>
    %cst_19 = arith.constant 0.000000e+00 : f32
    %174 = vector.broadcast %cst_19 : f32 to vector<8x512xf32>
    %175 = arith.subf %174, %173 : vector<8x512xf32>
    %176 = math.exp %175 : vector<8x512xf32>
    %177 = vector.broadcast %172 : vector<8x1xf32> to vector<8x512xf32>
    %178 = arith.mulf %177, %176 : vector<8x512xf32>
    %179 = arith.addf %166, %178 : vector<8x512xf32>
    %180 = vector.extract_strided_slice %1 {offsets = [0, 13], sizes = [8, 1], strides = [1, 1]} : vector<8x16xf32> to vector<8x1xf32>
    %181 = vector.extract_strided_slice %10 {offsets = [13, 0], sizes = [1, 512], strides = [1, 1]} : vector<16x512xf32> to vector<1x512xf32>
    %182 = vector.broadcast %180 : vector<8x1xf32> to vector<8x512xf32>
    %183 = vector.broadcast %181 : vector<1x512xf32> to vector<8x512xf32>
    %184 = arith.subf %182, %183 : vector<8x512xf32>
    %185 = vector.extract_strided_slice %2 {offsets = [0, 13], sizes = [8, 1], strides = [1, 1]} : vector<8x16xf32> to vector<8x1xf32>
    %186 = arith.mulf %184, %184 : vector<8x512xf32>
    %cst_20 = arith.constant 0.000000e+00 : f32
    %187 = vector.broadcast %cst_20 : f32 to vector<8x512xf32>
    %188 = arith.subf %187, %186 : vector<8x512xf32>
    %189 = math.exp %188 : vector<8x512xf32>
    %190 = vector.broadcast %185 : vector<8x1xf32> to vector<8x512xf32>
    %191 = arith.mulf %190, %189 : vector<8x512xf32>
    %192 = arith.addf %179, %191 : vector<8x512xf32>
    %193 = vector.extract_strided_slice %1 {offsets = [0, 14], sizes = [8, 1], strides = [1, 1]} : vector<8x16xf32> to vector<8x1xf32>
    %194 = vector.extract_strided_slice %10 {offsets = [14, 0], sizes = [1, 512], strides = [1, 1]} : vector<16x512xf32> to vector<1x512xf32>
    %195 = vector.broadcast %193 : vector<8x1xf32> to vector<8x512xf32>
    %196 = vector.broadcast %194 : vector<1x512xf32> to vector<8x512xf32>
    %197 = arith.subf %195, %196 : vector<8x512xf32>
    %198 = vector.extract_strided_slice %2 {offsets = [0, 14], sizes = [8, 1], strides = [1, 1]} : vector<8x16xf32> to vector<8x1xf32>
    %199 = arith.mulf %197, %197 : vector<8x512xf32>
    %cst_21 = arith.constant 0.000000e+00 : f32
    %200 = vector.broadcast %cst_21 : f32 to vector<8x512xf32>
    %201 = arith.subf %200, %199 : vector<8x512xf32>
    %202 = math.exp %201 : vector<8x512xf32>
    %203 = vector.broadcast %198 : vector<8x1xf32> to vector<8x512xf32>
    %204 = arith.mulf %203, %202 : vector<8x512xf32>
    %205 = arith.addf %192, %204 : vector<8x512xf32>
    %206 = vector.extract_strided_slice %1 {offsets = [0, 15], sizes = [8, 1], strides = [1, 1]} : vector<8x16xf32> to vector<8x1xf32>
    %207 = vector.extract_strided_slice %10 {offsets = [15, 0], sizes = [1, 512], strides = [1, 1]} : vector<16x512xf32> to vector<1x512xf32>
    %208 = vector.broadcast %206 : vector<8x1xf32> to vector<8x512xf32>
    %209 = vector.broadcast %207 : vector<1x512xf32> to vector<8x512xf32>
    %210 = arith.subf %208, %209 : vector<8x512xf32>
    %211 = vector.extract_strided_slice %2 {offsets = [0, 15], sizes = [8, 1], strides = [1, 1]} : vector<8x16xf32> to vector<8x1xf32>
    %212 = arith.mulf %210, %210 : vector<8x512xf32>
    %cst_22 = arith.constant 0.000000e+00 : f32
    %213 = vector.broadcast %cst_22 : f32 to vector<8x512xf32>
    %214 = arith.subf %213, %212 : vector<8x512xf32>
    %215 = math.exp %214 : vector<8x512xf32>
    %216 = vector.broadcast %211 : vector<8x1xf32> to vector<8x512xf32>
    %217 = arith.mulf %216, %215 : vector<8x512xf32>
    %218 = arith.addf %205, %217 : vector<8x512xf32>
    %219 = arith.negf %218 : vector<8x512xf32>
    %220 = math.exp %219 : vector<8x512xf32>
    %cst_23 = arith.constant 1.000000e+00 : f32
    %221 = vector.broadcast %cst_23 : f32 to vector<8x512xf32>
    %222 = arith.addf %221, %220 : vector<8x512xf32>
    %223 = arith.divf %221, %222 : vector<8x512xf32>
    %c0_24 = arith.constant 0 : index
    %224 = arith.index_cast %4 : i32 to index
    %225 = vector.load %arg7[%c0_24, %224] : memref<8x512xf32, #tpu.memory_space<vmem>>, vector<8x512xf32>
    tpu.vector_store %arg7[%c0_24, %224], %223 {strides = array<i32>} : memref<8x512xf32, #tpu.memory_space<vmem>>, vector<8x512xf32>,
    %c1_i32 = arith.constant 1 : i32
    return
  }
  func.func @transform_0(%arg0: i32, %arg1: i32) -> (i32, i32) {
    %c0_i32 = arith.constant 0 : i32
    %c0_i32_0 = arith.constant 0 : i32
    return %arg1, %c0_i32 : i32, i32
  }
  func.func @transform_1(%arg0: i32, %arg1: i32) -> (i32, i32) {
    %c0_i32 = arith.constant 0 : i32
    %c0_i32_0 = arith.constant 0 : i32
    return %arg0, %c0_i32 : i32, i32
  }
  func.func @transform_2(%arg0: i32, %arg1: i32) -> (i32, i32) {
    %c0_i32 = arith.constant 0 : i32
    %c0_i32_0 = arith.constant 0 : i32
    return %arg1, %c0_i32 : i32, i32
  }
  func.func @transform_3(%arg0: i32, %arg1: i32) -> (i32, i32) {
    %c0_i32 = arith.constant 0 : i32
    %c0_i32_0 = arith.constant 0 : i32
    return %c0_i32, %arg0 : i32, i32
  }
  func.func @transform_4(%arg0: i32, %arg1: i32) -> (i32, i32) {
    %c0_i32 = arith.constant 0 : i32
    %c0_i32_0 = arith.constant 0 : i32
    return %arg1, %c0_i32 : i32, i32
  }
  func.func @transform_5(%arg0: i32, %arg1: i32) -> (i32, i32) {
    %c0_i32 = arith.constant 0 : i32
    return %arg1, %arg0 : i32, i32
  }
}

</mosaic_0001>

<llo_original>
// kernel: tpu_custom_call.1
$region0: #{tpu_custom_call.1}
  #allocation0 [shape = 'u32[]', space=smem, size = 0x4, offset = 0x4, fixed_abs, tag = 'smem constant byte address 0x4 - core index']
  #allocation1 [shape = 'u32[144,128]{1,0:T(1,128)}', space=vmem, size = 0x12000, scoped, tag = 'internal scratch']
  %s0 = inlined_call_operand.hbm [shape: bf16[8,128], index: 0, kind: input, shape index: {}]
  %s1 = inlined_call_operand.hbm [shape: bf16[1024,128], index: 1, kind: input, shape index: {}]
  %s2 = inlined_call_operand.hbm [shape: f32[8,16], index: 2, kind: input, shape index: {}]
  %s3 = inlined_call_operand.hbm [shape: bf16[16,1024], index: 3, kind: input, shape index: {}]
  %s4 = inlined_call_operand.vmem [shape: f32[8,16], index: 4, kind: input, shape index: {}]
  %s5 = inlined_call_operand.hbm [shape: f32[8,1024], index: 5, kind: output, shape index: {}]
  %s6 = sld [smem:[#allocation0]]
  $region69: #{tpu_custom_call.1} parent=0
    _
  %s8 = ssub.s32 1, %s6
  %s9 = scalar_select 0, %s8, %s6
  $region1: #{tpu_custom_call.1} parent=0
    #allocation2 [shape = 'u8[2048]{0}', space=vmem, size = 0x800, scoped, tag = 'input window, operand 0, single buffered']
    #allocation3 [shape = 's32[2]{0}', space=sflag, size = 0x8, scoped, tag = 'scoped memory for tpu_custom_call.1']
    #allocation4 [shape = 's32[2]{0}', space=sflag, size = 0x8, scoped, tag = 'scoped memory for tpu_custom_call.1']
    #allocation5 [shape = 'u8[262144]{0}', space=vmem, size = 0x40000, scoped, tag = 'input window, operand 1']
    #allocation6 [shape = 's32[2]{0}', space=sflag, size = 0x8, scoped, tag = 'scoped memory for tpu_custom_call.1']
    #allocation7 [shape = 'u8[4096]{0}', space=vmem, size = 0x1000, scoped, tag = 'input window, operand 2, single buffered']
    #allocation8 [shape = 'u8[32768]{0}', space=vmem, size = 0x8000, scoped, tag = 'input window, operand 3']
    #allocation9 [shape = 's32[2]{0}', space=sflag, size = 0x8, scoped, tag = 'scoped memory for tpu_custom_call.1']
    #allocation10 [shape = 'u8[32768]{0}', space=vmem, size = 0x8000, scoped, tag = 'output window, operand 0']
    %10 = vsyncpa [#allocation3], 0
    %11 = vsyncpa [#allocation6], 0
    %s12 = scalar_lea.sflag [#allocation6], 1
    %13 = vsyncpa %s12, 0
    %14 = vsyncpa [#allocation9], 0
    %s15 = scalar_lea.sflag [#allocation9], 1
    %16 = vsyncpa %s15, 0
    %17 = vsyncpa [#allocation4], 0
    %s18 = scalar_lea.sflag [#allocation4], 1
    %19 = vsyncpa %s18, 0
    loop: start=0, step=1, limit=4
    $region2: #{tpu_custom_call.1} parent=1 // loop_pre_header
      _
    $region3: #{tpu_custom_call.1} parent=1 // loop_header
      %s21 = sphi 0, %s25
      %p22 = scmp.ge.s32.totalorder %s21, 4
      %s28 = sphi 0, %s40
      %s29 = sphi 0, %s36
      %s30 = sphi 0, %s28
      %s31 = sphi 0, %s29
      %s32 = sphi 0, %s30
      %s33 = sphi 0, %s31
      %s43 = sphi 0, %s45
      %s46 = sphi 0, %s43
      %s47 = sphi 0, %s46
      %s63 = sphi 0, %s47
      %s69 = sphi 0, %s71
      %s72 = sphi 0, %s69
      %s73 = sphi 0, %s72
      %s89 = sphi 0, %s73
      %s95 = sphi 0, %s97
      %s98 = sphi 0, %s95
      %s99 = sphi 0, %s98
      %s115 = sphi 0, %s99
      %s121 = sphi 0, %s123
      %s124 = sphi 0, %s121
      %s125 = sphi 0, %s124
      %s141 = sphi 0, %s125
      %s147 = sphi 0, %s149
      %s150 = sphi 0, %s147
      %s151 = sphi 0, %s150
      %s167 = sphi 0, %s151
      %s175 = sphi 0, %s177
      %s178 = sphi 0, %s175
      %s179 = sphi 0, %s178
      %s195 = sphi 0, %s179
    $region4: #{tpu_custom_call.1} parent=1 // loop_header_branch
      %24 = sbr.rel (%p22) target = $region8
    $region5: #{tpu_custom_call.1} parent=1 // loop_body
      %s26 = ssub.s32 %s21, 1
      %s27 = ssub.s32 %s21, 2
      %s34 = sadd.s32 1, %s29
      %p35 = scmp.ge.s32.totalorder %s34, 1
      %s36 = scalar_select %p35, 0, %s34
      %s37 = sadd.s32 1, %s28
      %s38 = scalar_select %p35, %s37, %s28
      %p39 = scmp.ge.s32.totalorder %s38, 2
      %s40 = scalar_select %p39, 0, %s38
      %s41 = ssub.s32 %s29, %s36
      %p42 = scmp.eq.s32.totalorder %s41, 0
      %s44 = sadd.s32 %s43, 1
      %s45 = scalar_select %p42, %s43, %s44
      %p48 = pneg %p42
      %p49 = scmp.eq.s32.totalorder %s21, 1
      %p50 = por %p48, %p49
      %p51 = scmp.ne.s32.totalorder %s43, %s46
      %p52 = scmp.eq.s32.totalorder %s21, 0
      %p53 = por %p51, %p52
      %p54 = scmp.ne.s32.totalorder %s43, %s46
      %p55 = scmp.eq.s32.totalorder %s26, 1
      %p56 = por %p54, %p55
      %p57 = scmp.ne.s32.totalorder %s46, %s47
      %p58 = scmp.eq.s32.totalorder %s26, 0
      %p59 = por %p57, %p58
      %p60 = scmp.ne.s32.totalorder %s46, %s47
      %p61 = scmp.eq.s32.totalorder %s27, 1
      %p62 = por %p60, %p61
      %p64 = scmp.ne.s32.totalorder %s47, %s63
      %p65 = scmp.eq.s32.totalorder %s27, 0
      %p66 = por %p64, %p65
      %s67 = ssub.s32 %s28, %s40
      %p68 = scmp.eq.s32.totalorder %s67, 0
      %s70 = sadd.s32 %s69, 1
      %s71 = scalar_select %p68, %s69, %s70
      %p74 = pneg %p68
      %p75 = scmp.eq.s32.totalorder %s21, 1
      %p76 = por %p74, %p75
      %p77 = scmp.ne.s32.totalorder %s69, %s72
      %p78 = scmp.eq.s32.totalorder %s21, 0
      %p79 = por %p77, %p78
      %p80 = scmp.ne.s32.totalorder %s69, %s72
      %p81 = scmp.eq.s32.totalorder %s26, 1
      %p82 = por %p80, %p81
      %p83 = scmp.ne.s32.totalorder %s72, %s73
      %p84 = scmp.eq.s32.totalorder %s26, 0
      %p85 = por %p83, %p84
      %p86 = scmp.ne.s32.totalorder %s72, %s73
      %p87 = scmp.eq.s32.totalorder %s27, 1
      %p88 = por %p86, %p87
      %p90 = scmp.ne.s32.totalorder %s73, %s89
      %p91 = scmp.eq.s32.totalorder %s27, 0
      %p92 = por %p90, %p91
      %s93 = ssub.s32 %s29, %s36
      %p94 = scmp.eq.s32.totalorder %s93, 0
      %s96 = sadd.s32 %s95, 1
      %s97 = scalar_select %p94, %s95, %s96
      %p100 = pneg %p94
      %p101 = scmp.eq.s32.totalorder %s21, 1
      %p102 = por %p100, %p101
      %p103 = scmp.ne.s32.totalorder %s95, %s98
      %p104 = scmp.eq.s32.totalorder %s21, 0
      %p105 = por %p103, %p104
      %p106 = scmp.ne.s32.totalorder %s95, %s98
      %p107 = scmp.eq.s32.totalorder %s26, 1
      %p108 = por %p106, %p107
      %p109 = scmp.ne.s32.totalorder %s98, %s99
      %p110 = scmp.eq.s32.totalorder %s26, 0
      %p111 = por %p109, %p110
      %p112 = scmp.ne.s32.totalorder %s98, %s99
      %p113 = scmp.eq.s32.totalorder %s27, 1
      %p114 = por %p112, %p113
      %p116 = scmp.ne.s32.totalorder %s99, %s115
      %p117 = scmp.eq.s32.totalorder %s27, 0
      %p118 = por %p116, %p117
      %s119 = ssub.s32 %s28, %s40
      %p120 = scmp.eq.s32.totalorder %s119, 0
      %s122 = sadd.s32 %s121, 1
      %s123 = scalar_select %p120, %s121, %s122
      %p126 = pneg %p120
      %p127 = scmp.eq.s32.totalorder %s21, 1
      %p128 = por %p126, %p127
      %p129 = scmp.ne.s32.totalorder %s121, %s124
      %p130 = scmp.eq.s32.totalorder %s21, 0
      %p131 = por %p129, %p130
      %p132 = scmp.ne.s32.totalorder %s121, %s124
      %p133 = scmp.eq.s32.totalorder %s26, 1
      %p134 = por %p132, %p133
      %p135 = scmp.ne.s32.totalorder %s124, %s125
      %p136 = scmp.eq.s32.totalorder %s26, 0
      %p137 = por %p135, %p136
      %p138 = scmp.ne.s32.totalorder %s124, %s125
      %p139 = scmp.eq.s32.totalorder %s27, 1
      %p140 = por %p138, %p139
      %p142 = scmp.ne.s32.totalorder %s125, %s141
      %p143 = scmp.eq.s32.totalorder %s27, 0
      %p144 = por %p142, %p143
      %s145 = ssub.s32 %s29, %s36
      %p146 = scmp.eq.s32.totalorder %s145, 0
      %s148 = sadd.s32 %s147, 1
      %s149 = scalar_select %p146, %s147, %s148
      %p152 = pneg %p146
      %p153 = scmp.eq.s32.totalorder %s21, 1
      %p154 = por %p152, %p153
      %p155 = scmp.ne.s32.totalorder %s147, %s150
      %p156 = scmp.eq.s32.totalorder %s21, 0
      %p157 = por %p155, %p156
      %p158 = scmp.ne.s32.totalorder %s147, %s150
      %p159 = scmp.eq.s32.totalorder %s26, 1
      %p160 = por %p158, %p159
      %p161 = scmp.ne.s32.totalorder %s150, %s151
      %p162 = scmp.eq.s32.totalorder %s26, 0
      %p163 = por %p161, %p162
      %p164 = scmp.ne.s32.totalorder %s150, %s151
      %p165 = scmp.eq.s32.totalorder %s27, 1
      %p166 = por %p164, %p165
      %p168 = scmp.ne.s32.totalorder %s151, %s167
      %p169 = scmp.eq.s32.totalorder %s27, 0
      %p170 = por %p168, %p169
      %s171 = ssub.s32 %s29, %s36
      %s172 = ssub.s32 %s28, %s40
      %s173 = sor.u32 %s171, %s172
      %p174 = scmp.eq.s32.totalorder %s173, 0
      %s176 = sadd.s32 %s175, 1
      %s177 = scalar_select %p174, %s175, %s176
      %p180 = pneg %p174
      %p181 = scmp.eq.s32.totalorder %s21, 1
      %p182 = por %p180, %p181
      %p183 = scmp.ne.s32.totalorder %s175, %s178
      %p184 = scmp.eq.s32.totalorder %s21, 0
      %p185 = por %p183, %p184
      %p186 = scmp.ne.s32.totalorder %s175, %s178
      %p187 = scmp.eq.s32.totalorder %s26, 1
      %p188 = por %p186, %p187
      %p189 = scmp.ne.s32.totalorder %s178, %s179
      %p190 = scmp.eq.s32.totalorder %s26, 0
      %p191 = por %p189, %p190
      %p192 = scmp.ne.s32.totalorder %s178, %s179
      %p193 = scmp.eq.s32.totalorder %s27, 1
      %p194 = por %p192, %p193
      %p196 = scmp.ne.s32.totalorder %s179, %s195
      %p197 = scmp.eq.s32.totalorder %s27, 0
      %p198 = por %p196, %p197
      %p199 = scmp.le.s32.totalorder 1, %s21
      %p200 = scmp.lt.s32.totalorder %s21, 3
      %p201 = pnand %p199, %p200
      %p202 = pneg %p201
      // Predicated region
      $region9: #{tpu_custom_call.1} parent=5 // pred_check
        _
      $region10: #{tpu_custom_call.1} parent=5 // pred_check_branch
        %204 = sbr.rel (%p201) target = $region12
      $region11: #{tpu_custom_call.1} parent=5 // pred_region
        %s205 = ssub.s32 %s21, 1
        // Predicated region
        $region13: #{tpu_custom_call.1} parent=11 // pred_check
          %p206 = pneg %p59
        $region14: #{tpu_custom_call.1} parent=11 // pred_check_branch
          %208 = sbr.rel (%p206) target = $region16
        $region15: #{tpu_custom_call.1} parent=11 // pred_region
          %s210 = ssub.s32 64, 64
          %211 = vsyncadd [#allocation3], %s210
          %s212 = smul.addr %s31, 64
          %s213 = scalar_lea.hbm %s0, %s212
          %s215 = sshll.u32 [#allocation2], 4
          %s216 = int_to_ptr.vmem [resolvable:$true] %s215
          %218 = dma.hbm_to_vmem [thread:$0]  %s213, 64, %s216, [#allocation3]
        $region16: #{tpu_custom_call.1} parent=11 // pred_fallthru
          _
        // Predicated region
        $region17: #{tpu_custom_call.1} parent=11 // pred_check
          %p219 = pneg %p111
        $region18: #{tpu_custom_call.1} parent=11 // pred_check_branch
          %221 = sbr.rel (%p219) target = $region20
        $region19: #{tpu_custom_call.1} parent=11 // pred_region
          %s223 = ssub.s32 128, 128
          %224 = vsyncadd [#allocation6], %s223
          %s225 = smul.addr %s31, 128
          %s226 = scalar_lea.hbm %s2, %s225
          %s228 = sshll.u32 [#allocation7], 4
          %s229 = int_to_ptr.vmem [resolvable:$true] %s228
          %231 = dma.hbm_to_vmem [thread:$0]  %s226, 128, %s229, [#allocation6]
        $region20: #{tpu_custom_call.1} parent=11 // pred_fallthru
          _
        // Predicated region
        $region21: #{tpu_custom_call.1} parent=11 // pred_check
          %p232 = pneg %p163
        $region22: #{tpu_custom_call.1} parent=11 // pred_check_branch
          %234 = sbr.rel (%p232) target = $region24
        $region23: #{tpu_custom_call.1} parent=11 // pred_region
          %p235 = scmp.lt.s32.totalorder %s31, 0
          %s236 = scalar_select %p235, %s31, 0
          %s237 = smul.addr %s236, 8
          %s238 = scalar_lea.vmem %s4, %s237
        $region24: #{tpu_custom_call.1} parent=11 // pred_fallthru
          _
      $region12: #{tpu_custom_call.1} parent=5 // pred_fallthru
        _
      %p239 = scmp.lt.s32.totalorder %s21, 2
      // Predicated region
      $region25: #{tpu_custom_call.1} parent=5 // pred_check
        %p240 = pneg %p239
      $region26: #{tpu_custom_call.1} parent=5 // pred_check_branch
        %242 = sbr.rel (%p240) target = $region28
      $region27: #{tpu_custom_call.1} parent=5 // pred_region
        // Predicated region
        $region29: #{tpu_custom_call.1} parent=27 // pred_check
          %p243 = pneg %p79
        $region30: #{tpu_custom_call.1} parent=27 // pred_check_branch
          %245 = sbr.rel (%p243) target = $region32
        $region31: #{tpu_custom_call.1} parent=27 // pred_region
          %s246 = sand.u32 %s21, 1
          %s247 = scalar_lea.sflag [#allocation6], %s246
          %s248 = sand.u32 %s69, 1
          %s249 = smul.addr %s248, 256
          %s250 = scalar_lea.vmem [#allocation5], %s249
          %s251 = smul.u32 64, %s28
          %s253 = ssub.s32 4096, 4096
          %254 = vsyncadd %s247, %s253
          %s255 = smul.addr %s251, 64
          %s256 = scalar_lea.hbm %s1, %s255
          %s257 = sshll.u32 %s250, 4
          %s258 = int_to_ptr.vmem [resolvable:$true] %s257
          %263 = dma.hbm_to_vmem [thread:$0]  %s256, 4096, %s258, %s247, 64, 64, 4
        $region32: #{tpu_custom_call.1} parent=27 // pred_fallthru
          _
        // Predicated region
        $region33: #{tpu_custom_call.1} parent=27 // pred_check
          %p264 = pneg %p131
        $region34: #{tpu_custom_call.1} parent=27 // pred_check_branch
          %266 = sbr.rel (%p264) target = $region36
        $region35: #{tpu_custom_call.1} parent=27 // pred_region
          %s267 = sand.u32 %s121, 1
          %s268 = scalar_lea.sflag [#allocation9], %s267
          %s269 = sand.u32 %s121, 1
          %s270 = smul.addr %s269, 32
          %s271 = scalar_lea.vmem [#allocation8], %s270
          %s272 = smul.u32 4, %s28
          %s274 = ssub.s32 512, 512
          %275 = vsyncadd %s268, %s274
          %s276 = smul.addr %s272, 64
          %s277 = scalar_lea.hbm %s3, %s276
          %s278 = sshll.u32 %s271, 4
          %s279 = int_to_ptr.vmem [resolvable:$true] %s278
          %284 = dma.hbm_to_vmem [thread:$0]  %s277, 512, %s279, %s268, 512, 256, 16
        $region36: #{tpu_custom_call.1} parent=27 // pred_fallthru
          _
      $region28: #{tpu_custom_call.1} parent=5 // pred_fallthru
        _
      %p285 = scmp.le.s32.totalorder 1, %s21
      %p286 = scmp.lt.s32.totalorder %s21, 3
      %p287 = pnand %p285, %p286
      %p288 = pneg %p287
      // Predicated region
      $region37: #{tpu_custom_call.1} parent=5 // pred_check
        _
      $region38: #{tpu_custom_call.1} parent=5 // pred_check_branch
        %290 = sbr.rel (%p287) target = $region40
      $region39: #{tpu_custom_call.1} parent=5 // pred_region
        %s291 = ssub.s32 %s21, 1
        // Predicated region
        $region41: #{tpu_custom_call.1} parent=39 // pred_check
          %p292 = pneg %p59
        $region42: #{tpu_custom_call.1} parent=39 // pred_check_branch
          %294 = sbr.rel (%p292) target = $region44
        $region43: #{tpu_custom_call.1} parent=39 // pred_region
          %295 = dma.done [#allocation3], 64
        $region44: #{tpu_custom_call.1} parent=39 // pred_fallthru
          _
        %s296 = sand.u32 %s26, 1
        %s297 = scalar_lea.sflag [#allocation6], %s296
        %s298 = sand.u32 %s72, 1
        %s299 = smul.addr %s298, 256
        %s300 = scalar_lea.vmem [#allocation5], %s299
        // Predicated region
        $region45: #{tpu_custom_call.1} parent=39 // pred_check
          %p301 = pneg %p85
        $region46: #{tpu_custom_call.1} parent=39 // pred_check_branch
          %303 = sbr.rel (%p301) target = $region48
        $region47: #{tpu_custom_call.1} parent=39 // pred_region
          %304 = dma.done %s297, 4096
        $region48: #{tpu_custom_call.1} parent=39 // pred_fallthru
          _
        // Predicated region
        $region49: #{tpu_custom_call.1} parent=39 // pred_check
          %p305 = pneg %p111
        $region50: #{tpu_custom_call.1} parent=39 // pred_check_branch
          %307 = sbr.rel (%p305) target = $region52
        $region51: #{tpu_custom_call.1} parent=39 // pred_region
          %308 = dma.done [#allocation6], 128
        $region52: #{tpu_custom_call.1} parent=39 // pred_fallthru
          _
        %s309 = sand.u32 %s124, 1
        %s310 = scalar_lea.sflag [#allocation9], %s309
        %s311 = sand.u32 %s124, 1
        %s312 = smul.addr %s311, 32
        %s313 = scalar_lea.vmem [#allocation8], %s312
        // Predicated region
        $region53: #{tpu_custom_call.1} parent=39 // pred_check
          %p314 = pneg %p137
        $region54: #{tpu_custom_call.1} parent=39 // pred_check_branch
          %316 = sbr.rel (%p314) target = $region56
        $region55: #{tpu_custom_call.1} parent=39 // pred_region
          %317 = dma.done %s310, 512
        $region56: #{tpu_custom_call.1} parent=39 // pred_fallthru
          _
        %p318 = pneg %p59
        %p319 = pneg %p56
        %s320 = sand.u32 %s26, 1
        %s321 = scalar_lea.sflag [#allocation6], %s320
        %s322 = sand.u32 %s72, 1
        %s323 = smul.addr %s322, 256
        %s324 = scalar_lea.vmem [#allocation5], %s323
        %p325 = pneg %p85
        %p326 = pneg %p82
        %p327 = pneg %p111
        %p328 = pneg %p108
        %s329 = sand.u32 %s124, 1
        %s330 = scalar_lea.sflag [#allocation9], %s329
        %s331 = sand.u32 %s124, 1
        %s332 = smul.addr %s331, 32
        %s333 = scalar_lea.vmem [#allocation8], %s332
        %p334 = pneg %p137
        %p335 = pneg %p134
        %p336 = scmp.lt.s32.totalorder %s31, 0
        %s337 = scalar_select %p336, %s31, 0
        %s338 = smul.addr %s337, 8
        %s339 = scalar_lea.vmem %s4, %s338
        %p340 = pneg %p163
        %p341 = pneg %p160
        %p342 = pneg %p191
        %p343 = pneg %p188
        %s344 = sand.u32 %s178, 1
        %s345 = scalar_lea.sflag [#allocation4], %s344
        %s346 = sand.u32 %s178, 1
        %s347 = smul.addr %s346, 32
        %s348 = scalar_lea.vmem [#allocation10], %s347
        %s349 = smul.u32 64, %s30
        %s350 = smul.u32 4, %s30
        %p351 = scmp.lt.s32.totalorder %s31, 0
        %s352 = scalar_select %p351, %s31, 0
        %s353 = smul.addr %s352, 8
        %s354 = scalar_lea.vmem %s4, %s353
        %s355 = smul.u32 4, %s30
        %v357 = vld [vmem:[#allocation2] sm:$0xf]
        %v358 = vld [vmem:[#allocation7] sm:$0xff]
        %v359 = vld [vmem:[%s354] sm:$0xff]
        %v360 = vld [vmem:[%s300] sm:$0xf]
        %v361 = vld [vmem:[%s300 + $0x4] sm:$0xf]
        %v362 = vld [vmem:[%s300 + $0x8] sm:$0xf]
        %v363 = vld [vmem:[%s300 + $0xc] sm:$0xf]
        %v364 = vld [vmem:[%s300 + $0x10] sm:$0xf]
        %v365 = vld [vmem:[%s300 + $0x14] sm:$0xf]
        %v366 = vld [vmem:[%s300 + $0x18] sm:$0xf]
        %v367 = vld [vmem:[%s300 + $0x1c] sm:$0xf]
        %v368 = vld [vmem:[%s300 + $0x20] sm:$0xf]
        %v369 = vld [vmem:[%s300 + $0x24] sm:$0xf]
        %v370 = vld [vmem:[%s300 + $0x28] sm:$0xf]
        %v371 = vld [vmem:[%s300 + $0x2c] sm:$0xf]
        %v372 = vld [vmem:[%s300 + $0x30] sm:$0xf]
        %v373 = vld [vmem:[%s300 + $0x34] sm:$0xf]
        %v374 = vld [vmem:[%s300 + $0x38] sm:$0xf]
        %v375 = vld [vmem:[%s300 + $0x3c] sm:$0xf]
        %v376 = vld [vmem:[%s300 + $0x40] sm:$0xf]
        %v377 = vld [vmem:[%s300 + $0x44] sm:$0xf]
        %v378 = vld [vmem:[%s300 + $0x48] sm:$0xf]
        %v379 = vld [vmem:[%s300 + $0x4c] sm:$0xf]
        %v380 = vld [vmem:[%s300 + $0x50] sm:$0xf]
        %v381 = vld [vmem:[%s300 + $0x54] sm:$0xf]
        %v382 = vld [vmem:[%s300 + $0x58] sm:$0xf]
        %v383 = vld [vmem:[%s300 + $0x5c] sm:$0xf]
        %v384 = vld [vmem:[%s300 + $0x60] sm:$0xf]
        %v385 = vld [vmem:[%s300 + $0x64] sm:$0xf]
        %v386 = vld [vmem:[%s300 + $0x68] sm:$0xf]
        %v387 = vld [vmem:[%s300 + $0x6c] sm:$0xf]
        %v388 = vld [vmem:[%s300 + $0x70] sm:$0xf]
        %v389 = vld [vmem:[%s300 + $0x74] sm:$0xf]
        %v390 = vld [vmem:[%s300 + $0x78] sm:$0xf]
        %v391 = vld [vmem:[%s300 + $0x7c] sm:$0xf]
        %v392 = vld [vmem:[%s300 + $0x80] sm:$0xf]
        %v393 = vld [vmem:[%s300 + $0x84] sm:$0xf]
        %v394 = vld [vmem:[%s300 + $0x88] sm:$0xf]
        %v395 = vld [vmem:[%s300 + $0x8c] sm:$0xf]
        %v396 = vld [vmem:[%s300 + $0x90] sm:$0xf]
        %v397 = vld [vmem:[%s300 + $0x94] sm:$0xf]
        %v398 = vld [vmem:[%s300 + $0x98] sm:$0xf]
        %v399 = vld [vmem:[%s300 + $0x9c] sm:$0xf]
        %v400 = vld [vmem:[%s300 + $0xa0] sm:$0xf]
        %v401 = vld [vmem:[%s300 + $0xa4] sm:$0xf]
        %v402 = vld [vmem:[%s300 + $0xa8] sm:$0xf]
        %v403 = vld [vmem:[%s300 + $0xac] sm:$0xf]
        %v404 = vld [vmem:[%s300 + $0xb0] sm:$0xf]
        %v405 = vld [vmem:[%s300 + $0xb4] sm:$0xf]
        %v406 = vld [vmem:[%s300 + $0xb8] sm:$0xf]
        %v407 = vld [vmem:[%s300 + $0xbc] sm:$0xf]
        %v408 = vld [vmem:[%s300 + $0xc0] sm:$0xf]
        %v409 = vld [vmem:[%s300 + $0xc4] sm:$0xf]
        %v410 = vld [vmem:[%s300 + $0xc8] sm:$0xf]
        %v411 = vld [vmem:[%s300 + $0xcc] sm:$0xf]
        %v412 = vld [vmem:[%s300 + $0xd0] sm:$0xf]
        %v413 = vld [vmem:[%s300 + $0xd4] sm:$0xf]
        %v414 = vld [vmem:[%s300 + $0xd8] sm:$0xf]
        %v415 = vld [vmem:[%s300 + $0xdc] sm:$0xf]
        %v416 = vld [vmem:[%s300 + $0xe0] sm:$0xf]
        %v417 = vld [vmem:[%s300 + $0xe4] sm:$0xf]
        %v418 = vld [vmem:[%s300 + $0xe8] sm:$0xf]
        %v419 = vld [vmem:[%s300 + $0xec] sm:$0xf]
        %v420 = vld [vmem:[%s300 + $0xf0] sm:$0xf]
        %v421 = vld [vmem:[%s300 + $0xf4] sm:$0xf]
        %v422 = vld [vmem:[%s300 + $0xf8] sm:$0xf]
        %v423 = vld [vmem:[%s300 + $0xfc] sm:$0xf]
        %v424 = vld [vmem:[%s313] sm:$0xff]
        %v425 = vld [vmem:[%s313 + $0x8] sm:$0xff]
        %v426 = vld [vmem:[%s313 + $0x10] sm:$0xff]
        %v427 = vld [vmem:[%s313 + $0x18] sm:$0xff]
        %v428 = vunpack.c.l.bf16 %v424
        %v429 = vunpack.c.h.bf16 %v424
        %v430 = vunpack.c.l.bf16 %v425
        %v431 = vunpack.c.h.bf16 %v425
        %v432 = vunpack.c.l.bf16 %v426
        %v433 = vunpack.c.h.bf16 %v426
        %v434 = vunpack.c.l.bf16 %v427
        %v435 = vunpack.c.h.bf16 %v427
        %437 = vset.pattern.permute.xlu0 0
        %438 = vperm.xlu0 %437, %v358
        %v439 = vpop.permute.xlu0 %438
        %v441 = vlaneseq
        %v442 = vshrl.u32 %v441, 7
        %v443 = vsub.s32 0, %v442
        %v444 = vrot.slane %v428, %v443
        %v445 = vlaneseq
        %v446 = vshrl.u32 %v445, 7
        %v447 = vsub.s32 0, %v446
        %v448 = vrot.slane %v429, %v447
        %v449 = vlaneseq
        %v450 = vshrl.u32 %v449, 7
        %v451 = vsub.s32 0, %v450
        %v452 = vrot.slane %v430, %v451
        %v453 = vlaneseq
        %v454 = vshrl.u32 %v453, 7
        %v455 = vsub.s32 0, %v454
        %v456 = vrot.slane %v431, %v455
        %v457 = vsub.f32 %v439, %v444
        %v458 = vsub.f32 %v439, %v448
        %v459 = vsub.f32 %v439, %v452
        %v460 = vsub.f32 %v439, %v456
        %v461 = vmul.f32 %v457, %v457
        %v462 = vmul.f32 %v458, %v458
        %v463 = vmul.f32 %v459, %v459
        %v464 = vmul.f32 %v460, %v460
        %v465 = vsub.f32 0.0, %v461
        %v466 = vsub.f32 0.0, %v462
        %v467 = vsub.f32 0.0, %v463
        %v468 = vsub.f32 0.0, %v464
        %v469 = vmul.f32 %v465, 1.442695
        %v470 = vpow.pop %v469
        %v471 = vmul.f32 %v466, 1.442695
        %v472 = vpow.pop %v471
        %v473 = vmul.f32 %v467, 1.442695
        %v474 = vpow.pop %v473
        %v475 = vmul.f32 %v468, 1.442695
        %v476 = vpow.pop %v475
        %478 = vset.pattern.permute.xlu0 0
        %479 = vperm.xlu0 %478, %v359
        %v480 = vpop.permute.xlu0 %479
        %v482 = vmul.f32 %v480, %v470
        %v483 = vmul.f32 %v480, %v472
        %v484 = vmul.f32 %v480, %v474
        %v485 = vmul.f32 %v480, %v476
        %v550 = vunpack.c.l.b16 %v360
        %v551 = vunpack.c.l.b16 %v361
        %v552 = vunpack.c.l.b16 %v362
        %v553 = vunpack.c.l.b16 %v363
        %v554 = vunpack.c.l.b16 %v364
        %v555 = vunpack.c.l.b16 %v365
        %v556 = vunpack.c.l.b16 %v366
        %v557 = vunpack.c.l.b16 %v367
        %v558 = vunpack.c.l.b16 %v368
        %v559 = vunpack.c.l.b16 %v369
        %v560 = vunpack.c.l.b16 %v370
        %v561 = vunpack.c.l.b16 %v371
        %v562 = vunpack.c.l.b16 %v372
        %v563 = vunpack.c.l.b16 %v373
        %v564 = vunpack.c.l.b16 %v374
        %v565 = vunpack.c.l.b16 %v375
        %v566 = vunpack.c.l.b16 %v376
        %v567 = vunpack.c.l.b16 %v377
        %v568 = vunpack.c.l.b16 %v378
        %v569 = vunpack.c.l.b16 %v379
        %v570 = vunpack.c.l.b16 %v380
        %v571 = vunpack.c.l.b16 %v381
        %v572 = vunpack.c.l.b16 %v382
        %v573 = vunpack.c.l.b16 %v383
        %v574 = vunpack.c.l.b16 %v384
        %v575 = vunpack.c.l.b16 %v385
        %v576 = vunpack.c.l.b16 %v386
        %v577 = vunpack.c.l.b16 %v387
        %v578 = vunpack.c.l.b16 %v388
        %v579 = vunpack.c.l.b16 %v389
        %v580 = vunpack.c.l.b16 %v390
        %v581 = vunpack.c.l.b16 %v391
        %v582 = vunpack.c.l.b16 %v392
        %v583 = vunpack.c.l.b16 %v393
        %v584 = vunpack.c.l.b16 %v394
        %v585 = vunpack.c.l.b16 %v395
        %v586 = vunpack.c.l.b16 %v396
        %v587 = vunpack.c.l.b16 %v397
        %v588 = vunpack.c.l.b16 %v398
        %v589 = vunpack.c.l.b16 %v399
        %v590 = vunpack.c.l.b16 %v400
        %v591 = vunpack.c.l.b16 %v401
        %v592 = vunpack.c.l.b16 %v402
        %v593 = vunpack.c.l.b16 %v403
        %v594 = vunpack.c.l.b16 %v404
        %v595 = vunpack.c.l.b16 %v405
        %v596 = vunpack.c.l.b16 %v406
        %v597 = vunpack.c.l.b16 %v407
        %v598 = vunpack.c.l.b16 %v408
        %v599 = vunpack.c.l.b16 %v409
        %v600 = vunpack.c.l.b16 %v410
        %v601 = vunpack.c.l.b16 %v411
        %v602 = vunpack.c.l.b16 %v412
        %v603 = vunpack.c.l.b16 %v413
        %v604 = vunpack.c.l.b16 %v414
        %v605 = vunpack.c.l.b16 %v415
        %v606 = vunpack.c.l.b16 %v416
        %v607 = vunpack.c.l.b16 %v417
        %v608 = vunpack.c.l.b16 %v418
        %v609 = vunpack.c.l.b16 %v419
        %v610 = vunpack.c.l.b16 %v420
        %v611 = vunpack.c.l.b16 %v421
        %v612 = vunpack.c.l.b16 %v422
        %v613 = vunpack.c.l.b16 %v423
        %v614 = vpack.c.b16 %v551, %v550
        %v615 = vpack.c.b16 %v553, %v552
        %v616 = vpack.c.b16 %v555, %v554
        %v617 = vpack.c.b16 %v557, %v556
        %v618 = vpack.c.b16 %v559, %v558
        %v619 = vpack.c.b16 %v561, %v560
        %v620 = vpack.c.b16 %v563, %v562
        %v621 = vpack.c.b16 %v565, %v564
        %v622 = vpack.c.b16 %v567, %v566
        %v623 = vpack.c.b16 %v569, %v568
        %v624 = vpack.c.b16 %v571, %v570
        %v625 = vpack.c.b16 %v573, %v572
        %v626 = vpack.c.b16 %v575, %v574
        %v627 = vpack.c.b16 %v577, %v576
        %v628 = vpack.c.b16 %v579, %v578
        %v629 = vpack.c.b16 %v581, %v580
        %v630 = vpack.c.b16 %v583, %v582
        %v631 = vpack.c.b16 %v585, %v584
        %v632 = vpack.c.b16 %v587, %v586
        %v633 = vpack.c.b16 %v589, %v588
        %v634 = vpack.c.b16 %v591, %v590
        %v635 = vpack.c.b16 %v593, %v592
        %v636 = vpack.c.b16 %v595, %v594
        %v637 = vpack.c.b16 %v597, %v596
        %v638 = vpack.c.b16 %v599, %v598
        %v639 = vpack.c.b16 %v601, %v600
        %v640 = vpack.c.b16 %v603, %v602
        %v641 = vpack.c.b16 %v605, %v604
        %v642 = vpack.c.b16 %v607, %v606
        %v643 = vpack.c.b16 %v609, %v608
        %v644 = vpack.c.b16 %v611, %v610
        %v645 = vpack.c.b16 %v613, %v612
        %678 = vmatprep.subr.bf16.mxu0 0
        %679 = vmatpush1.bf16.xpose.msra.mxu0 %v614
        %680 = vmatprep.subr.bf16.mxu0 0
        %681 = vmatpush1.bf16.xpose.msra.mxu0 %v615
        %682 = vmatprep.subr.bf16.mxu0 0
        %683 = vmatpush1.bf16.xpose.msra.mxu0 %v616
        %684 = vmatprep.subr.bf16.mxu0 0
        %685 = vmatpush1.bf16.xpose.msra.mxu0 %v617
        %686 = vmatprep.subr.bf16.mxu0 0
        %687 = vmatpush1.bf16.xpose.msra.mxu0 %v618
        %688 = vmatprep.subr.bf16.mxu0 0
        %689 = vmatpush1.bf16.xpose.msra.mxu0 %v619
        %690 = vmatprep.subr.bf16.mxu0 0
        %691 = vmatpush1.bf16.xpose.msra.mxu0 %v620
        %692 = vmatprep.subr.bf16.mxu0 0
        %693 = vmatpush1.bf16.xpose.msra.mxu0 %v621
        %694 = vmatprep.subr.bf16.mxu0 0
        %695 = vmatpush1.bf16.xpose.msra.mxu0 %v622
        %696 = vmatprep.subr.bf16.mxu0 0
        %697 = vmatpush1.bf16.xpose.msra.mxu0 %v623
        %698 = vmatprep.subr.bf16.mxu0 0
        %699 = vmatpush1.bf16.xpose.msra.mxu0 %v624
        %700 = vmatprep.subr.bf16.mxu0 0
        %701 = vmatpush1.bf16.xpose.msra.mxu0 %v625
        %702 = vmatprep.subr.bf16.mxu0 0
        %703 = vmatpush1.bf16.xpose.msra.mxu0 %v626
        %704 = vmatprep.subr.bf16.mxu0 0
        %705 = vmatpush1.bf16.xpose.msra.mxu0 %v627
        %706 = vmatprep.subr.bf16.mxu0 0
        %707 = vmatpush1.bf16.xpose.msra.mxu0 %v628
        %708 = vmatprep.subr.bf16.mxu0 0
        %709 = vmatpush1.bf16.xpose.msra.mxu0 %v629
        %710 = vmatprep.mubr.bf16.mxu0 0
        %711 = vmatmul.mubr.bf16.gmra.mrb[0].mxu0 %v357
        %v712 = vpop.f32.mrb[0].mxu0
        %v713 = vadd.f32 %v482, %v712
        %v714 = vpop.f32.mrb[0].mxu0
        %v715 = vadd.f32 %v483, %v714
        %v716 = vpop.f32.mrb[0].mxu0
        %v717 = vpop.f32.mrb[0].mxu0
        %718 = vdwg.mxu0
        %719 = vmatprep.subr.bf16.mxu0 0
        %720 = vmatpush1.bf16.xpose.msra.mxu0 %v630
        %721 = vmatprep.subr.bf16.mxu0 0
        %722 = vmatpush1.bf16.xpose.msra.mxu0 %v631
        %723 = vmatprep.subr.bf16.mxu0 0
        %724 = vmatpush1.bf16.xpose.msra.mxu0 %v632
        %725 = vmatprep.subr.bf16.mxu0 0
        %726 = vmatpush1.bf16.xpose.msra.mxu0 %v633
        %727 = vmatprep.subr.bf16.mxu0 0
        %728 = vmatpush1.bf16.xpose.msra.mxu0 %v634
        %729 = vmatprep.subr.bf16.mxu0 0
        %730 = vmatpush1.bf16.xpose.msra.mxu0 %v635
        %731 = vmatprep.subr.bf16.mxu0 0
        %732 = vmatpush1.bf16.xpose.msra.mxu0 %v636
        %733 = vmatprep.subr.bf16.mxu0 0
        %734 = vmatpush1.bf16.xpose.msra.mxu0 %v637
        %735 = vmatprep.subr.bf16.mxu0 0
        %736 = vmatpush1.bf16.xpose.msra.mxu0 %v638
        %737 = vmatprep.subr.bf16.mxu0 0
        %738 = vmatpush1.bf16.xpose.msra.mxu0 %v639
        %739 = vmatprep.subr.bf16.mxu0 0
        %740 = vmatpush1.bf16.xpose.msra.mxu0 %v640
        %741 = vmatprep.subr.bf16.mxu0 0
        %742 = vmatpush1.bf16.xpose.msra.mxu0 %v641
        %743 = vmatprep.subr.bf16.mxu0 0
        %744 = vmatpush1.bf16.xpose.msra.mxu0 %v642
        %745 = vmatprep.subr.bf16.mxu0 0
        %746 = vmatpush1.bf16.xpose.msra.mxu0 %v643
        %747 = vmatprep.subr.bf16.mxu0 0
        %748 = vmatpush1.bf16.xpose.msra.mxu0 %v644
        %749 = vmatprep.subr.bf16.mxu0 0
        %750 = vmatpush1.bf16.xpose.msra.mxu0 %v645
        %751 = vmatprep.mubr.bf16.mxu0 0
        %752 = vmatmul.mubr.bf16.gmra.mrb[0].mxu0 %v357
        %v753 = vpop.f32.mrb[0].mxu0
        %v754 = vadd.f32 %v484, %v753
        %v755 = vpop.f32.mrb[0].mxu0
        %v756 = vadd.f32 %v485, %v755
        %v757 = vpop.f32.mrb[0].mxu0
        %v758 = vpop.f32.mrb[0].mxu0
        %759 = vdwg.mxu0
        %760 = vset.pattern.permute.xlu0 1
        %761 = vperm.xlu0 %760, %v358
        %v762 = vpop.permute.xlu0 %761
        %v764 = vlaneseq
        %v765 = vshrl.u32 %v764, 7
        %v766 = vsub.s32 1, %v765
        %v767 = vrot.slane %v428, %v766
        %v768 = vlaneseq
        %v769 = vshrl.u32 %v768, 7
        %v770 = vsub.s32 1, %v769
        %v771 = vrot.slane %v429, %v770
        %v772 = vlaneseq
        %v773 = vshrl.u32 %v772, 7
        %v774 = vsub.s32 1, %v773
        %v775 = vrot.slane %v430, %v774
        %v776 = vlaneseq
        %v777 = vshrl.u32 %v776, 7
        %v778 = vsub.s32 1, %v777
        %v779 = vrot.slane %v431, %v778
        %v780 = vsub.f32 %v762, %v767
        %v781 = vsub.f32 %v762, %v771
        %v782 = vsub.f32 %v762, %v775
        %v783 = vsub.f32 %v762, %v779
        %v784 = vmul.f32 %v780, %v780
        %v785 = vmul.f32 %v781, %v781
        %v786 = vmul.f32 %v782, %v782
        %v787 = vmul.f32 %v783, %v783
        %v788 = vsub.f32 0.0, %v784
        %v789 = vsub.f32 0.0, %v785
        %v790 = vsub.f32 0.0, %v786
        %v791 = vsub.f32 0.0, %v787
        %v792 = vmul.f32 %v788, 1.442695
        %v793 = vpow.pop %v792
        %v794 = vmul.f32 %v789, 1.442695
        %v795 = vpow.pop %v794
        %v796 = vmul.f32 %v790, 1.442695
        %v797 = vpow.pop %v796
        %v798 = vmul.f32 %v791, 1.442695
        %v799 = vpow.pop %v798
        %800 = vset.pattern.permute.xlu0 1
        %801 = vperm.xlu0 %800, %v359
        %v802 = vpop.permute.xlu0 %801
        %v804 = vmul.f32 %v802, %v793
        %v805 = vmul.f32 %v802, %v795
        %v806 = vmul.f32 %v802, %v797
        %v807 = vmul.f32 %v802, %v799
        %v808 = vadd.f32 %v713, %v804
        %v809 = vadd.f32 %v715, %v805
        %v810 = vadd.f32 %v754, %v806
        %v811 = vadd.f32 %v756, %v807
        %812 = vset.pattern.permute.xlu0 2
        %813 = vperm.xlu0 %812, %v358
        %v814 = vpop.permute.xlu0 %813
        %v816 = vlaneseq
        %v817 = vshrl.u32 %v816, 7
        %v818 = vsub.s32 2, %v817
        %v819 = vrot.slane %v428, %v818
        %v820 = vlaneseq
        %v821 = vshrl.u32 %v820, 7
        %v822 = vsub.s32 2, %v821
        %v823 = vrot.slane %v429, %v822
        %v824 = vlaneseq
        %v825 = vshrl.u32 %v824, 7
        %v826 = vsub.s32 2, %v825
        %v827 = vrot.slane %v430, %v826
        %v828 = vlaneseq
        %v829 = vshrl.u32 %v828, 7
        %v830 = vsub.s32 2, %v829
        %v831 = vrot.slane %v431, %v830
        %v832 = vsub.f32 %v814, %v819
        %v833 = vsub.f32 %v814, %v823
        %v834 = vsub.f32 %v814, %v827
        %v835 = vsub.f32 %v814, %v831
        %v836 = vmul.f32 %v832, %v832
        %v837 = vmul.f32 %v833, %v833
        %v838 = vmul.f32 %v834, %v834
        %v839 = vmul.f32 %v835, %v835
        %v840 = vsub.f32 0.0, %v836
        %v841 = vsub.f32 0.0, %v837
        %v842 = vsub.f32 0.0, %v838
        %v843 = vsub.f32 0.0, %v839
        %v844 = vmul.f32 %v840, 1.442695
        %v845 = vpow.pop %v844
        %v846 = vmul.f32 %v841, 1.442695
        %v847 = vpow.pop %v846
        %v848 = vmul.f32 %v842, 1.442695
        %v849 = vpow.pop %v848
        %v850 = vmul.f32 %v843, 1.442695
        %v851 = vpow.pop %v850
        %852 = vset.pattern.permute.xlu0 2
        %853 = vperm.xlu0 %852, %v359
        %v854 = vpop.permute.xlu0 %853
        %v856 = vmul.f32 %v854, %v845
        %v857 = vmul.f32 %v854, %v847
        %v858 = vmul.f32 %v854, %v849
        %v859 = vmul.f32 %v854, %v851
        %v860 = vadd.f32 %v808, %v856
        %v861 = vadd.f32 %v809, %v857
        %v862 = vadd.f32 %v810, %v858
        %v863 = vadd.f32 %v811, %v859
        %864 = vset.pattern.permute.xlu0 3
        %865 = vperm.xlu0 %864, %v358
        %v866 = vpop.permute.xlu0 %865
        %v868 = vlaneseq
        %v869 = vshrl.u32 %v868, 7
        %v870 = vsub.s32 3, %v869
        %v871 = vrot.slane %v428, %v870
        %v872 = vlaneseq
        %v873 = vshrl.u32 %v872, 7
        %v874 = vsub.s32 3, %v873
        %v875 = vrot.slane %v429, %v874
        %v876 = vlaneseq
        %v877 = vshrl.u32 %v876, 7
        %v878 = vsub.s32 3, %v877
        %v879 = vrot.slane %v430, %v878
        %v880 = vlaneseq
        %v881 = vshrl.u32 %v880, 7
        %v882 = vsub.s32 3, %v881
        %v883 = vrot.slane %v431, %v882
        %v884 = vsub.f32 %v866, %v871
        %v885 = vsub.f32 %v866, %v875
        %v886 = vsub.f32 %v866, %v879
        %v887 = vsub.f32 %v866, %v883
        %v888 = vmul.f32 %v884, %v884
        %v889 = vmul.f32 %v885, %v885
        %v890 = vmul.f32 %v886, %v886
        %v891 = vmul.f32 %v887, %v887
        %v892 = vsub.f32 0.0, %v888
        %v893 = vsub.f32 0.0, %v889
        %v894 = vsub.f32 0.0, %v890
        %v895 = vsub.f32 0.0, %v891
        %v896 = vmul.f32 %v892, 1.442695
        %v897 = vpow.pop %v896
        %v898 = vmul.f32 %v893, 1.442695
        %v899 = vpow.pop %v898
        %v900 = vmul.f32 %v894, 1.442695
        %v901 = vpow.pop %v900
        %v902 = vmul.f32 %v895, 1.442695
        %v903 = vpow.pop %v902
        %904 = vset.pattern.permute.xlu0 3
        %905 = vperm.xlu0 %904, %v359
        %v906 = vpop.permute.xlu0 %905
        %v908 = vmul.f32 %v906, %v897
        %v909 = vmul.f32 %v906, %v899
        %v910 = vmul.f32 %v906, %v901
        %v911 = vmul.f32 %v906, %v903
        %v912 = vadd.f32 %v860, %v908
        %v913 = vadd.f32 %v861, %v909
        %v914 = vadd.f32 %v862, %v910
        %v915 = vadd.f32 %v863, %v911
        %916 = vset.pattern.permute.xlu0 4
        %917 = vperm.xlu0 %916, %v358
        %v918 = vpop.permute.xlu0 %917
        %v920 = vlaneseq
        %v921 = vshrl.u32 %v920, 7
        %v922 = vsub.s32 4, %v921
        %v923 = vrot.slane %v428, %v922
        %v924 = vlaneseq
        %v925 = vshrl.u32 %v924, 7
        %v926 = vsub.s32 4, %v925
        %v927 = vrot.slane %v429, %v926
        %v928 = vlaneseq
        %v929 = vshrl.u32 %v928, 7
        %v930 = vsub.s32 4, %v929
        %v931 = vrot.slane %v430, %v930
        %v932 = vlaneseq
        %v933 = vshrl.u32 %v932, 7
        %v934 = vsub.s32 4, %v933
        %v935 = vrot.slane %v431, %v934
        %v936 = vsub.f32 %v918, %v923
        %v937 = vsub.f32 %v918, %v927
        %v938 = vsub.f32 %v918, %v931
        %v939 = vsub.f32 %v918, %v935
        %v940 = vmul.f32 %v936, %v936
        %v941 = vmul.f32 %v937, %v937
        %v942 = vmul.f32 %v938, %v938
        %v943 = vmul.f32 %v939, %v939
        %v944 = vsub.f32 0.0, %v940
        %v945 = vsub.f32 0.0, %v941
        %v946 = vsub.f32 0.0, %v942
        %v947 = vsub.f32 0.0, %v943
        %v948 = vmul.f32 %v944, 1.442695
        %v949 = vpow.pop %v948
        %v950 = vmul.f32 %v945, 1.442695
        %v951 = vpow.pop %v950
        %v952 = vmul.f32 %v946, 1.442695
        %v953 = vpow.pop %v952
        %v954 = vmul.f32 %v947, 1.442695
        %v955 = vpow.pop %v954
        %956 = vset.pattern.permute.xlu0 4
        %957 = vperm.xlu0 %956, %v359
        %v958 = vpop.permute.xlu0 %957
        %v960 = vmul.f32 %v958, %v949
        %v961 = vmul.f32 %v958, %v951
        %v962 = vmul.f32 %v958, %v953
        %v963 = vmul.f32 %v958, %v955
        %v964 = vadd.f32 %v912, %v960
        %v965 = vadd.f32 %v913, %v961
        %v966 = vadd.f32 %v914, %v962
        %v967 = vadd.f32 %v915, %v963
        %968 = vset.pattern.permute.xlu0 5
        %969 = vperm.xlu0 %968, %v358
        %v970 = vpop.permute.xlu0 %969
        %v972 = vlaneseq
        %v973 = vshrl.u32 %v972, 7
        %v974 = vsub.s32 5, %v973
        %v975 = vrot.slane %v428, %v974
        %v976 = vlaneseq
        %v977 = vshrl.u32 %v976, 7
        %v978 = vsub.s32 5, %v977
        %v979 = vrot.slane %v429, %v978
        %v980 = vlaneseq
        %v981 = vshrl.u32 %v980, 7
        %v982 = vsub.s32 5, %v981
        %v983 = vrot.slane %v430, %v982
        %v984 = vlaneseq
        %v985 = vshrl.u32 %v984, 7
        %v986 = vsub.s32 5, %v985
        %v987 = vrot.slane %v431, %v986
        %v988 = vsub.f32 %v970, %v975
        %v989 = vsub.f32 %v970, %v979
        %v990 = vsub.f32 %v970, %v983
        %v991 = vsub.f32 %v970, %v987
        %v992 = vmul.f32 %v988, %v988
        %v993 = vmul.f32 %v989, %v989
        %v994 = vmul.f32 %v990, %v990
        %v995 = vmul.f32 %v991, %v991
        %v996 = vsub.f32 0.0, %v992
        %v997 = vsub.f32 0.0, %v993
        %v998 = vsub.f32 0.0, %v994
        %v999 = vsub.f32 0.0, %v995
        %v1000 = vmul.f32 %v996, 1.442695
        %v1001 = vpow.pop %v1000
        %v1002 = vmul.f32 %v997, 1.442695
        %v1003 = vpow.pop %v1002
        %v1004 = vmul.f32 %v998, 1.442695
        %v1005 = vpow.pop %v1004
        %v1006 = vmul.f32 %v999, 1.442695
        %v1007 = vpow.pop %v1006
        %1008 = vset.pattern.permute.xlu0 5
        %1009 = vperm.xlu0 %1008, %v359
        %v1010 = vpop.permute.xlu0 %1009
        %v1012 = vmul.f32 %v1010, %v1001
        %v1013 = vmul.f32 %v1010, %v1003
        %v1014 = vmul.f32 %v1010, %v1005
        %v1015 = vmul.f32 %v1010, %v1007
        %v1016 = vadd.f32 %v964, %v1012
        %v1017 = vadd.f32 %v965, %v1013
        %v1018 = vadd.f32 %v966, %v1014
        %v1019 = vadd.f32 %v967, %v1015
        %1020 = vset.pattern.permute.xlu0 6
        %1021 = vperm.xlu0 %1020, %v358
        %v1022 = vpop.permute.xlu0 %1021
        %v1024 = vlaneseq
        %v1025 = vshrl.u32 %v1024, 7
        %v1026 = vsub.s32 6, %v1025
        %v1027 = vrot.slane %v428, %v1026
        %v1028 = vlaneseq
        %v1029 = vshrl.u32 %v1028, 7
        %v1030 = vsub.s32 6, %v1029
        %v1031 = vrot.slane %v429, %v1030
        %v1032 = vlaneseq
        %v1033 = vshrl.u32 %v1032, 7
        %v1034 = vsub.s32 6, %v1033
        %v1035 = vrot.slane %v430, %v1034
        %v1036 = vlaneseq
        %v1037 = vshrl.u32 %v1036, 7
        %v1038 = vsub.s32 6, %v1037
        %v1039 = vrot.slane %v431, %v1038
        %v1040 = vsub.f32 %v1022, %v1027
        %v1041 = vsub.f32 %v1022, %v1031
        %v1042 = vsub.f32 %v1022, %v1035
        %v1043 = vsub.f32 %v1022, %v1039
        %v1044 = vmul.f32 %v1040, %v1040
        %v1045 = vmul.f32 %v1041, %v1041
        %v1046 = vmul.f32 %v1042, %v1042
        %v1047 = vmul.f32 %v1043, %v1043
        %v1048 = vsub.f32 0.0, %v1044
        %v1049 = vsub.f32 0.0, %v1045
        %v1050 = vsub.f32 0.0, %v1046
        %v1051 = vsub.f32 0.0, %v1047
        %v1052 = vmul.f32 %v1048, 1.442695
        %v1053 = vpow.pop %v1052
        %v1054 = vmul.f32 %v1049, 1.442695
        %v1055 = vpow.pop %v1054
        %v1056 = vmul.f32 %v1050, 1.442695
        %v1057 = vpow.pop %v1056
        %v1058 = vmul.f32 %v1051, 1.442695
        %v1059 = vpow.pop %v1058
        %1060 = vset.pattern.permute.xlu0 6
        %1061 = vperm.xlu0 %1060, %v359
        %v1062 = vpop.permute.xlu0 %1061
        %v1064 = vmul.f32 %v1062, %v1053
        %v1065 = vmul.f32 %v1062, %v1055
        %v1066 = vmul.f32 %v1062, %v1057
        %v1067 = vmul.f32 %v1062, %v1059
        %v1068 = vadd.f32 %v1016, %v1064
        %v1069 = vadd.f32 %v1017, %v1065
        %v1070 = vadd.f32 %v1018, %v1066
        %v1071 = vadd.f32 %v1019, %v1067
        %1072 = vset.pattern.permute.xlu0 7
        %1073 = vperm.xlu0 %1072, %v358
        %v1074 = vpop.permute.xlu0 %1073
        %v1076 = vlaneseq
        %v1077 = vshrl.u32 %v1076, 7
        %v1078 = vsub.s32 7, %v1077
        %v1079 = vrot.slane %v428, %v1078
        %v1080 = vlaneseq
        %v1081 = vshrl.u32 %v1080, 7
        %v1082 = vsub.s32 7, %v1081
        %v1083 = vrot.slane %v429, %v1082
        %v1084 = vlaneseq
        %v1085 = vshrl.u32 %v1084, 7
        %v1086 = vsub.s32 7, %v1085
        %v1087 = vrot.slane %v430, %v1086
        %v1088 = vlaneseq
        %v1089 = vshrl.u32 %v1088, 7
        %v1090 = vsub.s32 7, %v1089
        %v1091 = vrot.slane %v431, %v1090
        %v1092 = vsub.f32 %v1074, %v1079
        %v1093 = vsub.f32 %v1074, %v1083
        %v1094 = vsub.f32 %v1074, %v1087
        %v1095 = vsub.f32 %v1074, %v1091
        %v1096 = vmul.f32 %v1092, %v1092
        %v1097 = vmul.f32 %v1093, %v1093
        %v1098 = vmul.f32 %v1094, %v1094
        %v1099 = vmul.f32 %v1095, %v1095
        %v1100 = vsub.f32 0.0, %v1096
        %v1101 = vsub.f32 0.0, %v1097
        %v1102 = vsub.f32 0.0, %v1098
        %v1103 = vsub.f32 0.0, %v1099
        %v1104 = vmul.f32 %v1100, 1.442695
        %v1105 = vpow.pop %v1104
        %v1106 = vmul.f32 %v1101, 1.442695
        %v1107 = vpow.pop %v1106
        %v1108 = vmul.f32 %v1102, 1.442695
        %v1109 = vpow.pop %v1108
        %v1110 = vmul.f32 %v1103, 1.442695
        %v1111 = vpow.pop %v1110
        %1112 = vset.pattern.permute.xlu0 7
        %1113 = vperm.xlu0 %1112, %v359
        %v1114 = vpop.permute.xlu0 %1113
        %v1116 = vmul.f32 %v1114, %v1105
        %v1117 = vmul.f32 %v1114, %v1107
        %v1118 = vmul.f32 %v1114, %v1109
        %v1119 = vmul.f32 %v1114, %v1111
        %v1120 = vadd.f32 %v1068, %v1116
        %v1121 = vadd.f32 %v1069, %v1117
        %v1122 = vadd.f32 %v1070, %v1118
        %v1123 = vadd.f32 %v1071, %v1119
        %1124 = vset.pattern.permute.xlu0 8
        %1125 = vperm.xlu0 %1124, %v358
        %v1126 = vpop.permute.xlu0 %1125
        %v1128 = vlaneseq
        %v1129 = vshrl.u32 %v1128, 7
        %v1130 = vsub.s32 0, %v1129
        %v1131 = vrot.slane %v432, %v1130
        %v1132 = vlaneseq
        %v1133 = vshrl.u32 %v1132, 7
        %v1134 = vsub.s32 0, %v1133
        %v1135 = vrot.slane %v433, %v1134
        %v1136 = vlaneseq
        %v1137 = vshrl.u32 %v1136, 7
        %v1138 = vsub.s32 0, %v1137
        %v1139 = vrot.slane %v434, %v1138
        %v1140 = vlaneseq
        %v1141 = vshrl.u32 %v1140, 7
        %v1142 = vsub.s32 0, %v1141
        %v1143 = vrot.slane %v435, %v1142
        %v1144 = vsub.f32 %v1126, %v1131
        %v1145 = vsub.f32 %v1126, %v1135
        %v1146 = vsub.f32 %v1126, %v1139
        %v1147 = vsub.f32 %v1126, %v1143
        %v1148 = vmul.f32 %v1144, %v1144
        %v1149 = vmul.f32 %v1145, %v1145
        %v1150 = vmul.f32 %v1146, %v1146
        %v1151 = vmul.f32 %v1147, %v1147
        %v1152 = vsub.f32 0.0, %v1148
        %v1153 = vsub.f32 0.0, %v1149
        %v1154 = vsub.f32 0.0, %v1150
        %v1155 = vsub.f32 0.0, %v1151
        %v1156 = vmul.f32 %v1152, 1.442695
        %v1157 = vpow.pop %v1156
        %v1158 = vmul.f32 %v1153, 1.442695
        %v1159 = vpow.pop %v1158
        %v1160 = vmul.f32 %v1154, 1.442695
        %v1161 = vpow.pop %v1160
        %v1162 = vmul.f32 %v1155, 1.442695
        %v1163 = vpow.pop %v1162
        %1164 = vset.pattern.permute.xlu0 8
        %1165 = vperm.xlu0 %1164, %v359
        %v1166 = vpop.permute.xlu0 %1165
        %v1168 = vmul.f32 %v1166, %v1157
        %v1169 = vmul.f32 %v1166, %v1159
        %v1170 = vmul.f32 %v1166, %v1161
        %v1171 = vmul.f32 %v1166, %v1163
        %v1172 = vadd.f32 %v1120, %v1168
        %v1173 = vadd.f32 %v1121, %v1169
        %v1174 = vadd.f32 %v1122, %v1170
        %v1175 = vadd.f32 %v1123, %v1171
        %1176 = vset.pattern.permute.xlu0 9
        %1177 = vperm.xlu0 %1176, %v358
        %v1178 = vpop.permute.xlu0 %1177
        %v1180 = vlaneseq
        %v1181 = vshrl.u32 %v1180, 7
        %v1182 = vsub.s32 1, %v1181
        %v1183 = vrot.slane %v432, %v1182
        %v1184 = vlaneseq
        %v1185 = vshrl.u32 %v1184, 7
        %v1186 = vsub.s32 1, %v1185
        %v1187 = vrot.slane %v433, %v1186
        %v1188 = vlaneseq
        %v1189 = vshrl.u32 %v1188, 7
        %v1190 = vsub.s32 1, %v1189
        %v1191 = vrot.slane %v434, %v1190
        %v1192 = vlaneseq
        %v1193 = vshrl.u32 %v1192, 7
        %v1194 = vsub.s32 1, %v1193
        %v1195 = vrot.slane %v435, %v1194
        %v1196 = vsub.f32 %v1178, %v1183
        %v1197 = vsub.f32 %v1178, %v1187
        %v1198 = vsub.f32 %v1178, %v1191
        %v1199 = vsub.f32 %v1178, %v1195
        %v1200 = vmul.f32 %v1196, %v1196
        %v1201 = vmul.f32 %v1197, %v1197
        %v1202 = vmul.f32 %v1198, %v1198
        %v1203 = vmul.f32 %v1199, %v1199
        %v1204 = vsub.f32 0.0, %v1200
        %v1205 = vsub.f32 0.0, %v1201
        %v1206 = vsub.f32 0.0, %v1202
        %v1207 = vsub.f32 0.0, %v1203
        %v1208 = vmul.f32 %v1204, 1.442695
        %v1209 = vpow.pop %v1208
        %v1210 = vmul.f32 %v1205, 1.442695
        %v1211 = vpow.pop %v1210
        %v1212 = vmul.f32 %v1206, 1.442695
        %v1213 = vpow.pop %v1212
        %v1214 = vmul.f32 %v1207, 1.442695
        %v1215 = vpow.pop %v1214
        %1216 = vset.pattern.permute.xlu0 9
        %1217 = vperm.xlu0 %1216, %v359
        %v1218 = vpop.permute.xlu0 %1217
        %v1220 = vmul.f32 %v1218, %v1209
        %v1221 = vmul.f32 %v1218, %v1211
        %v1222 = vmul.f32 %v1218, %v1213
        %v1223 = vmul.f32 %v1218, %v1215
        %v1224 = vadd.f32 %v1172, %v1220
        %v1225 = vadd.f32 %v1173, %v1221
        %v1226 = vadd.f32 %v1174, %v1222
        %v1227 = vadd.f32 %v1175, %v1223
        %1228 = vset.pattern.permute.xlu0 10
        %1229 = vperm.xlu0 %1228, %v358
        %v1230 = vpop.permute.xlu0 %1229
        %v1232 = vlaneseq
        %v1233 = vshrl.u32 %v1232, 7
        %v1234 = vsub.s32 2, %v1233
        %v1235 = vrot.slane %v432, %v1234
        %v1236 = vlaneseq
        %v1237 = vshrl.u32 %v1236, 7
        %v1238 = vsub.s32 2, %v1237
        %v1239 = vrot.slane %v433, %v1238
        %v1240 = vlaneseq
        %v1241 = vshrl.u32 %v1240, 7
        %v1242 = vsub.s32 2, %v1241
        %v1243 = vrot.slane %v434, %v1242
        %v1244 = vlaneseq
        %v1245 = vshrl.u32 %v1244, 7
        %v1246 = vsub.s32 2, %v1245
        %v1247 = vrot.slane %v435, %v1246
        %v1248 = vsub.f32 %v1230, %v1235
        %v1249 = vsub.f32 %v1230, %v1239
        %v1250 = vsub.f32 %v1230, %v1243
        %v1251 = vsub.f32 %v1230, %v1247
        %v1252 = vmul.f32 %v1248, %v1248
        %v1253 = vmul.f32 %v1249, %v1249
        %v1254 = vmul.f32 %v1250, %v1250
        %v1255 = vmul.f32 %v1251, %v1251
        %v1256 = vsub.f32 0.0, %v1252
        %v1257 = vsub.f32 0.0, %v1253
        %v1258 = vsub.f32 0.0, %v1254
        %v1259 = vsub.f32 0.0, %v1255
        %v1260 = vmul.f32 %v1256, 1.442695
        %v1261 = vpow.pop %v1260
        %v1262 = vmul.f32 %v1257, 1.442695
        %v1263 = vpow.pop %v1262
        %v1264 = vmul.f32 %v1258, 1.442695
        %v1265 = vpow.pop %v1264
        %v1266 = vmul.f32 %v1259, 1.442695
        %v1267 = vpow.pop %v1266
        %1268 = vset.pattern.permute.xlu0 10
        %1269 = vperm.xlu0 %1268, %v359
        %v1270 = vpop.permute.xlu0 %1269
        %v1272 = vmul.f32 %v1270, %v1261
        %v1273 = vmul.f32 %v1270, %v1263
        %v1274 = vmul.f32 %v1270, %v1265
        %v1275 = vmul.f32 %v1270, %v1267
        %v1276 = vadd.f32 %v1224, %v1272
        %v1277 = vadd.f32 %v1225, %v1273
        %v1278 = vadd.f32 %v1226, %v1274
        %v1279 = vadd.f32 %v1227, %v1275
        %1280 = vset.pattern.permute.xlu0 11
        %1281 = vperm.xlu0 %1280, %v358
        %v1282 = vpop.permute.xlu0 %1281
        %v1284 = vlaneseq
        %v1285 = vshrl.u32 %v1284, 7
        %v1286 = vsub.s32 3, %v1285
        %v1287 = vrot.slane %v432, %v1286
        %v1288 = vlaneseq
        %v1289 = vshrl.u32 %v1288, 7
        %v1290 = vsub.s32 3, %v1289
        %v1291 = vrot.slane %v433, %v1290
        %v1292 = vlaneseq
        %v1293 = vshrl.u32 %v1292, 7
        %v1294 = vsub.s32 3, %v1293
        %v1295 = vrot.slane %v434, %v1294
        %v1296 = vlaneseq
        %v1297 = vshrl.u32 %v1296, 7
        %v1298 = vsub.s32 3, %v1297
        %v1299 = vrot.slane %v435, %v1298
        %v1300 = vsub.f32 %v1282, %v1287
        %v1301 = vsub.f32 %v1282, %v1291
        %v1302 = vsub.f32 %v1282, %v1295
        %v1303 = vsub.f32 %v1282, %v1299
        %v1304 = vmul.f32 %v1300, %v1300
        %v1305 = vmul.f32 %v1301, %v1301
        %v1306 = vmul.f32 %v1302, %v1302
        %v1307 = vmul.f32 %v1303, %v1303
        %v1308 = vsub.f32 0.0, %v1304
        %v1309 = vsub.f32 0.0, %v1305
        %v1310 = vsub.f32 0.0, %v1306
        %v1311 = vsub.f32 0.0, %v1307
        %v1312 = vmul.f32 %v1308, 1.442695
        %v1313 = vpow.pop %v1312
        %v1314 = vmul.f32 %v1309, 1.442695
        %v1315 = vpow.pop %v1314
        %v1316 = vmul.f32 %v1310, 1.442695
        %v1317 = vpow.pop %v1316
        %v1318 = vmul.f32 %v1311, 1.442695
        %v1319 = vpow.pop %v1318
        %1320 = vset.pattern.permute.xlu0 11
        %1321 = vperm.xlu0 %1320, %v359
        %v1322 = vpop.permute.xlu0 %1321
        %v1324 = vmul.f32 %v1322, %v1313
        %v1325 = vmul.f32 %v1322, %v1315
        %v1326 = vmul.f32 %v1322, %v1317
        %v1327 = vmul.f32 %v1322, %v1319
        %v1328 = vadd.f32 %v1276, %v1324
        %v1329 = vadd.f32 %v1277, %v1325
        %v1330 = vadd.f32 %v1278, %v1326
        %v1331 = vadd.f32 %v1279, %v1327
        %1332 = vset.pattern.permute.xlu0 12
        %1333 = vperm.xlu0 %1332, %v358
        %v1334 = vpop.permute.xlu0 %1333
        %v1336 = vlaneseq
        %v1337 = vshrl.u32 %v1336, 7
        %v1338 = vsub.s32 4, %v1337
        %v1339 = vrot.slane %v432, %v1338
        %v1340 = vlaneseq
        %v1341 = vshrl.u32 %v1340, 7
        %v1342 = vsub.s32 4, %v1341
        %v1343 = vrot.slane %v433, %v1342
        %v1344 = vlaneseq
        %v1345 = vshrl.u32 %v1344, 7
        %v1346 = vsub.s32 4, %v1345
        %v1347 = vrot.slane %v434, %v1346
        %v1348 = vlaneseq
        %v1349 = vshrl.u32 %v1348, 7
        %v1350 = vsub.s32 4, %v1349
        %v1351 = vrot.slane %v435, %v1350
        %v1352 = vsub.f32 %v1334, %v1339
        %v1353 = vsub.f32 %v1334, %v1343
        %v1354 = vsub.f32 %v1334, %v1347
        %v1355 = vsub.f32 %v1334, %v1351
        %v1356 = vmul.f32 %v1352, %v1352
        %v1357 = vmul.f32 %v1353, %v1353
        %v1358 = vmul.f32 %v1354, %v1354
        %v1359 = vmul.f32 %v1355, %v1355
        %v1360 = vsub.f32 0.0, %v1356
        %v1361 = vsub.f32 0.0, %v1357
        %v1362 = vsub.f32 0.0, %v1358
        %v1363 = vsub.f32 0.0, %v1359
        %v1364 = vmul.f32 %v1360, 1.442695
        %v1365 = vpow.pop %v1364
        %v1366 = vmul.f32 %v1361, 1.442695
        %v1367 = vpow.pop %v1366
        %v1368 = vmul.f32 %v1362, 1.442695
        %v1369 = vpow.pop %v1368
        %v1370 = vmul.f32 %v1363, 1.442695
        %v1371 = vpow.pop %v1370
        %1372 = vset.pattern.permute.xlu0 12
        %1373 = vperm.xlu0 %1372, %v359
        %v1374 = vpop.permute.xlu0 %1373
        %v1376 = vmul.f32 %v1374, %v1365
        %v1377 = vmul.f32 %v1374, %v1367
        %v1378 = vmul.f32 %v1374, %v1369
        %v1379 = vmul.f32 %v1374, %v1371
        %v1380 = vadd.f32 %v1328, %v1376
        %v1381 = vadd.f32 %v1329, %v1377
        %v1382 = vadd.f32 %v1330, %v1378
        %v1383 = vadd.f32 %v1331, %v1379
        %1384 = vset.pattern.permute.xlu0 13
        %1385 = vperm.xlu0 %1384, %v358
        %v1386 = vpop.permute.xlu0 %1385
        %v1388 = vlaneseq
        %v1389 = vshrl.u32 %v1388, 7
        %v1390 = vsub.s32 5, %v1389
        %v1391 = vrot.slane %v432, %v1390
        %v1392 = vlaneseq
        %v1393 = vshrl.u32 %v1392, 7
        %v1394 = vsub.s32 5, %v1393
        %v1395 = vrot.slane %v433, %v1394
        %v1396 = vlaneseq
        %v1397 = vshrl.u32 %v1396, 7
        %v1398 = vsub.s32 5, %v1397
        %v1399 = vrot.slane %v434, %v1398
        %v1400 = vlaneseq
        %v1401 = vshrl.u32 %v1400, 7
        %v1402 = vsub.s32 5, %v1401
        %v1403 = vrot.slane %v435, %v1402
        %v1404 = vsub.f32 %v1386, %v1391
        %v1405 = vsub.f32 %v1386, %v1395
        %v1406 = vsub.f32 %v1386, %v1399
        %v1407 = vsub.f32 %v1386, %v1403
        %v1408 = vmul.f32 %v1404, %v1404
        %v1409 = vmul.f32 %v1405, %v1405
        %v1410 = vmul.f32 %v1406, %v1406
        %v1411 = vmul.f32 %v1407, %v1407
        %v1412 = vsub.f32 0.0, %v1408
        %v1413 = vsub.f32 0.0, %v1409
        %v1414 = vsub.f32 0.0, %v1410
        %v1415 = vsub.f32 0.0, %v1411
        %v1416 = vmul.f32 %v1412, 1.442695
        %v1417 = vpow.pop %v1416
        %v1418 = vmul.f32 %v1413, 1.442695
        %v1419 = vpow.pop %v1418
        %v1420 = vmul.f32 %v1414, 1.442695
        %v1421 = vpow.pop %v1420
        %v1422 = vmul.f32 %v1415, 1.442695
        %v1423 = vpow.pop %v1422
        %1424 = vset.pattern.permute.xlu0 13
        %1425 = vperm.xlu0 %1424, %v359
        %v1426 = vpop.permute.xlu0 %1425
        %v1428 = vmul.f32 %v1426, %v1417
        %v1429 = vmul.f32 %v1426, %v1419
        %v1430 = vmul.f32 %v1426, %v1421
        %v1431 = vmul.f32 %v1426, %v1423
        %v1432 = vadd.f32 %v1380, %v1428
        %v1433 = vadd.f32 %v1381, %v1429
        %v1434 = vadd.f32 %v1382, %v1430
        %v1435 = vadd.f32 %v1383, %v1431
        %1436 = vset.pattern.permute.xlu0 14
        %1437 = vperm.xlu0 %1436, %v358
        %v1438 = vpop.permute.xlu0 %1437
        %v1440 = vlaneseq
        %v1441 = vshrl.u32 %v1440, 7
        %v1442 = vsub.s32 6, %v1441
        %v1443 = vrot.slane %v432, %v1442
        %v1444 = vlaneseq
        %v1445 = vshrl.u32 %v1444, 7
        %v1446 = vsub.s32 6, %v1445
        %v1447 = vrot.slane %v433, %v1446
        %v1448 = vlaneseq
        %v1449 = vshrl.u32 %v1448, 7
        %v1450 = vsub.s32 6, %v1449
        %v1451 = vrot.slane %v434, %v1450
        %v1452 = vlaneseq
        %v1453 = vshrl.u32 %v1452, 7
        %v1454 = vsub.s32 6, %v1453
        %v1455 = vrot.slane %v435, %v1454
        %v1456 = vsub.f32 %v1438, %v1443
        %v1457 = vsub.f32 %v1438, %v1447
        %v1458 = vsub.f32 %v1438, %v1451
        %v1459 = vsub.f32 %v1438, %v1455
        %v1460 = vmul.f32 %v1456, %v1456
        %v1461 = vmul.f32 %v1457, %v1457
        %v1462 = vmul.f32 %v1458, %v1458
        %v1463 = vmul.f32 %v1459, %v1459
        %v1464 = vsub.f32 0.0, %v1460
        %v1465 = vsub.f32 0.0, %v1461
        %v1466 = vsub.f32 0.0, %v1462
        %v1467 = vsub.f32 0.0, %v1463
        %v1468 = vmul.f32 %v1464, 1.442695
        %v1469 = vpow.pop %v1468
        %v1470 = vmul.f32 %v1465, 1.442695
        %v1471 = vpow.pop %v1470
        %v1472 = vmul.f32 %v1466, 1.442695
        %v1473 = vpow.pop %v1472
        %v1474 = vmul.f32 %v1467, 1.442695
        %v1475 = vpow.pop %v1474
        %1476 = vset.pattern.permute.xlu0 14
        %1477 = vperm.xlu0 %1476, %v359
        %v1478 = vpop.permute.xlu0 %1477
        %v1480 = vmul.f32 %v1478, %v1469
        %v1481 = vmul.f32 %v1478, %v1471
        %v1482 = vmul.f32 %v1478, %v1473
        %v1483 = vmul.f32 %v1478, %v1475
        %v1484 = vadd.f32 %v1432, %v1480
        %v1485 = vadd.f32 %v1433, %v1481
        %v1486 = vadd.f32 %v1434, %v1482
        %v1487 = vadd.f32 %v1435, %v1483
        %1488 = vset.pattern.permute.xlu0 15
        %1489 = vperm.xlu0 %1488, %v358
        %v1490 = vpop.permute.xlu0 %1489
        %v1492 = vlaneseq
        %v1493 = vshrl.u32 %v1492, 7
        %v1494 = vsub.s32 7, %v1493
        %v1495 = vrot.slane %v432, %v1494
        %v1496 = vlaneseq
        %v1497 = vshrl.u32 %v1496, 7
        %v1498 = vsub.s32 7, %v1497
        %v1499 = vrot.slane %v433, %v1498
        %v1500 = vlaneseq
        %v1501 = vshrl.u32 %v1500, 7
        %v1502 = vsub.s32 7, %v1501
        %v1503 = vrot.slane %v434, %v1502
        %v1504 = vlaneseq
        %v1505 = vshrl.u32 %v1504, 7
        %v1506 = vsub.s32 7, %v1505
        %v1507 = vrot.slane %v435, %v1506
        %v1508 = vsub.f32 %v1490, %v1495
        %v1509 = vsub.f32 %v1490, %v1499
        %v1510 = vsub.f32 %v1490, %v1503
        %v1511 = vsub.f32 %v1490, %v1507
        %v1512 = vmul.f32 %v1508, %v1508
        %v1513 = vmul.f32 %v1509, %v1509
        %v1514 = vmul.f32 %v1510, %v1510
        %v1515 = vmul.f32 %v1511, %v1511
        %v1516 = vsub.f32 0.0, %v1512
        %v1517 = vsub.f32 0.0, %v1513
        %v1518 = vsub.f32 0.0, %v1514
        %v1519 = vsub.f32 0.0, %v1515
        %v1520 = vmul.f32 %v1516, 1.442695
        %v1521 = vpow.pop %v1520
        %v1522 = vmul.f32 %v1517, 1.442695
        %v1523 = vpow.pop %v1522
        %v1524 = vmul.f32 %v1518, 1.442695
        %v1525 = vpow.pop %v1524
        %v1526 = vmul.f32 %v1519, 1.442695
        %v1527 = vpow.pop %v1526
        %1528 = vset.pattern.permute.xlu0 15
        %1529 = vperm.xlu0 %1528, %v359
        %v1530 = vpop.permute.xlu0 %1529
        %v1532 = vmul.f32 %v1530, %v1521
        %v1533 = vmul.f32 %v1530, %v1523
        %v1534 = vmul.f32 %v1530, %v1525
        %v1535 = vmul.f32 %v1530, %v1527
        %v1536 = vadd.f32 %v1484, %v1532
        %v1537 = vadd.f32 %v1485, %v1533
        %v1538 = vadd.f32 %v1486, %v1534
        %v1539 = vadd.f32 %v1487, %v1535
        %v1540 = vxor.u32 %v1536, 2147483648
        %v1541 = vxor.u32 %v1537, 2147483648
        %v1542 = vxor.u32 %v1538, 2147483648
        %v1543 = vxor.u32 %v1539, 2147483648
        %v1544 = vmul.f32 %v1540, 1.442695
        %v1545 = vpow.pop %v1544
        %v1546 = vmul.f32 %v1541, 1.442695
        %v1547 = vpow.pop %v1546
        %v1548 = vmul.f32 %v1542, 1.442695
        %v1549 = vpow.pop %v1548
        %v1550 = vmul.f32 %v1543, 1.442695
        %v1551 = vpow.pop %v1550
        %v1552 = vadd.f32 %v1545, 1.0
        %v1553 = vadd.f32 %v1547, 1.0
        %v1554 = vadd.f32 %v1549, 1.0
        %v1555 = vadd.f32 %v1551, 1.0
        %v1556 = vrcp.pop %v1552
        %v1557 = vmul.f32 1.0, %v1556
        %v1558 = vrcp.pop %v1553
        %v1559 = vmul.f32 1.0, %v1558
        %v1560 = vrcp.pop %v1554
        %v1561 = vmul.f32 1.0, %v1560
        %v1562 = vrcp.pop %v1555
        %v1563 = vmul.f32 1.0, %v1562
        %1564 = vst [vmem:[%s348] sm:$0xff] %v1557
        %1565 = vst [vmem:[%s348 + $0x8] sm:$0xff] %v1559
        %1566 = vst [vmem:[%s348 + $0x10] sm:$0xff] %v1561
        %1567 = vst [vmem:[%s348 + $0x18] sm:$0xff] %v1563
        %s1568 = sand.u32 %s178, 1
        %s1569 = scalar_lea.sflag [#allocation4], %s1568
        %s1570 = sand.u32 %s178, 1
        %s1571 = smul.addr %s1570, 32
        %s1572 = scalar_lea.vmem [#allocation10], %s1571
        // Predicated region
        $region57: #{tpu_custom_call.1} parent=39 // pred_check
          %p1573 = pneg %p188
        $region58: #{tpu_custom_call.1} parent=39 // pred_check_branch
          %1575 = sbr.rel (%p1573) target = $region60
        $region59: #{tpu_custom_call.1} parent=39 // pred_region
          %s1576 = smul.u32 4, %s30
          %s1578 = ssub.s32 512, 512
          %1579 = vsyncadd %s1569, %s1578
          %s1580 = smul.addr %s31, 8
          %s1581 = sadd.s32 %s1576, %s1580
          %s1582 = smul.addr %s1581, 128
          %s1583 = scalar_lea.hbm %s5, %s1582
          %s1585 = sshll.u32 %s1572, 4
          %s1586 = int_to_ptr.vmem [resolvable:$true] %s1585
          %1588 = dma.vmem_to_hbm [thread:$0]  %s1586, 512, %s1583, %s1569
        $region60: #{tpu_custom_call.1} parent=39 // pred_fallthru
          _
      $region40: #{tpu_custom_call.1} parent=5 // pred_fallthru
        _
      %p1589 = scmp.le.s32.totalorder 2, %s21
      // Predicated region
      $region61: #{tpu_custom_call.1} parent=5 // pred_check
        %p1590 = pneg %p1589
      $region62: #{tpu_custom_call.1} parent=5 // pred_check_branch
        %1592 = sbr.rel (%p1590) target = $region64
      $region63: #{tpu_custom_call.1} parent=5 // pred_region
        %s1593 = ssub.s32 %s21, 2
        // Predicated region
        $region65: #{tpu_custom_call.1} parent=63 // pred_check
          %p1594 = pneg %p194
        $region66: #{tpu_custom_call.1} parent=63 // pred_check_branch
          %1596 = sbr.rel (%p1594) target = $region68
        $region67: #{tpu_custom_call.1} parent=63 // pred_region
          %s1597 = sand.u32 %s179, 1
          %s1598 = scalar_lea.sflag [#allocation4], %s1597
          %s1599 = sand.u32 %s179, 1
          %s1600 = smul.addr %s1599, 32
          %s1601 = scalar_lea.vmem [#allocation10], %s1600
          %1602 = dma.done %s1598, 512
        $region68: #{tpu_custom_call.1} parent=63 // pred_fallthru
          _
      $region64: #{tpu_custom_call.1} parent=5 // pred_fallthru
        _
    $region6: #{tpu_custom_call.1} parent=1 // loop_footer
      %s25 = sadd.s32 1, %s21
    $region7: #{tpu_custom_call.1} parent=1 // loop_footer_branch
      %20 = sbr.rel target = $region3
    $region8: #{tpu_custom_call.1} parent=1 // loop_exit
      _
    %1603 = vsyncpa [#allocation3], 1
    %s1604 = scalar_lea.sflag [#allocation3], 1
    %1605 = vsyncpa %s1604, 1
    %1606 = vsyncpa [#allocation6], 1
    %s1607 = scalar_lea.sflag [#allocation6], 1
    %1608 = vsyncpa %s1607, 1
    %1609 = vsyncpa [#allocation9], 1
    %s1610 = scalar_lea.sflag [#allocation9], 1
    %1611 = vsyncpa %s1610, 1
    %1612 = vsyncpa [#allocation4], 1
    %s1613 = scalar_lea.sflag [#allocation4], 1
    %1614 = vsyncpa %s1613, 1

</llo_original>
